<compile_context>
chip_gen: v6e
topology: v6e:2x2x1
jax: 0.10.0
libtpu: 0.0.40
codegen_flags: <defaults>
</compile_context>

<pallas_src>
import functools

import jax
import jax.numpy as jnp
from jax.experimental import pallas as pl
from jax.experimental.pallas import tpu as pltpu

LAMBDA_TV = 0.001          # self.init_tv
LAMBDA_NORM = 100.0        # self.lambda_norm
TARGET_CHANNELS = (0, 1)   # the two neuron-excitation losses read feature ch. 0, 1

_MAX_BATCH_PER_BLOCK = 8          # caps the in-kernel unroll
_TARGET_BLOCK_BYTES = 2 * 2**20   # aim for ~2 MiB raw-input blocks per grid step


def _visu_kernel(params_ref, pmat_ref, dwmat_ref, dhmat_ref, x_ref, out_ref, *,
                 G, C, W, Hs, Ws, coef_feat, coef_norm, coef_h, coef_w):
    """One block = G batch elements of the raw noise image.

    params_ref : SMEM (2*(C+1),)  [w[0,t],..,w[C-1,t],b[t]] for target channels t.
    pmat_ref   : VMEM (W, Ws)   2x2-average-pool weights (W direction), fetched once.
    dwmat_ref  : VMEM (Ws, Ws)  right-difference matrix (TV along W), last col 0.
    dhmat_ref  : VMEM (Hs, Hs)  left-difference matrix  (TV along H), last row 0.
    x_ref      : VMEM (G, C, Hs, 2W)  raw rows 2h | 2h+1 side by side on lanes.
    out_ref    : VMEM (1, 1, 128)  fully weighted partial loss (wrapper sums).
    """
    pmat = pmat_ref[...]
    dwmat = dwmat_ref[...]
    dhmat = dhmat_ref[...]

    # Single weighted-contribution accumulator -> one jnp.sum at the end.
    acc = jnp.zeros((Hs, Ws), jnp.float32)

    for g in range(G):                      # G is capped (<= _MAX_BATCH_PER_BLOCK)
        xs_c = []
        for c in range(C):
            row_pair = x_ref[g, c]                      # (Hs, 2W)
            # ---- fused 2x2 pool: H half = lane-half add, W half = MXU matmul.
            xh = row_pair[:, :W] + row_pair[:, W:]      # (Hs, W)
            pooled = jnp.dot(xh, pmat,
                             preferred_element_type=jnp.float32)   # (Hs, Ws)
            # ---- prepare_rgb_img: sigmoid via one tanh EUP op per element.
            xs = 0.5 * jnp.tanh(0.5 * pooled) + 0.5
            xs_c.append(xs)

            # ---- ImageNorm contribution.
            acc = acc + coef_norm * (xs * xs)
            # ---- TVLoss contributions via MXU difference matrices (no shifted
            #      slice copies; invalid last row/col are zeroed by the matrices).
            if coef_w != 0.0:
                dw = jnp.dot(xs, dwmat, preferred_element_type=jnp.float32)
                acc = acc + coef_w * (dw * dw)
            if coef_h != 0.0:
                dh = jnp.dot(dhmat, xs, preferred_element_type=jnp.float32)
                acc = acc + coef_h * (dh * dh)

        # ---- feature_layer (1x1 conv + ReLU) restricted to the channels the
        #      losses read: per-pixel VPU FMAs with SMEM scalar weights.
        for t in range(len(TARGET_CHANNELS)):
            base = t * (C + 1)
            f = params_ref[base + C] + params_ref[base + 0] * xs_c[0]
            for c in range(1, C):
                f = f + params_ref[base + c] * xs_c[c]
            acc = acc + coef_feat * jnp.maximum(f, 0.0)

    partial = jnp.sum(acc)                               # single cross-lane reduce
    out_ref[...] = jnp.broadcast_to(partial, out_ref.shape)


def visu_forward(noise_nchw, w, b):
    """Forward pass of ParametrizedImageVisualizer. Returns a scalar loss."""
    noise = noise_nchw.astype(jnp.float32)
    B, C, H, W = noise.shape
    assert H % 2 == 0 and W % 2 == 0, "2x2 average pool needs even spatial dims"
    Hs, Ws = H // 2, W // 2

    # Free (bitcast) reshape: raw rows 2h and 2h+1 of each channel end up side by
    # side on the lane axis -> the pool is fully fused, raw noise is read once.
    x2 = noise.reshape(B, C, Hs, 2 * W)

    # 1x1-conv params for the two target channels, flattened to 1-D for SMEM
    # (a 2-D SMEM array would pad to [8,128] words).
    idx = jnp.asarray(TARGET_CHANNELS, dtype=jnp.int32)
    params = jnp.concatenate(
        [jnp.transpose(w.astype(jnp.float32)[:, idx]),           # (2, C)
         b.astype(jnp.float32)[idx][:, None]],                   # (2, 1)
        axis=1).reshape(-1)                                      # (2*(C+1),)

    # Small constant matrices (built once in XLA, DMA'd to VMEM once).
    kk = jnp.arange(W)[:, None]
    ww = jnp.arange(Ws)[None, :]
    pmat = (kk // 2 == ww).astype(jnp.float32) * 0.25            # (W, Ws)

    j = jnp.arange(Ws)
    dwmat = ((j[:, None] == j[None, :] + 1).astype(jnp.float32)
             - (j[:, None] == j[None, :]).astype(jnp.float32))
    dwmat = dwmat * (j[None, :] < Ws - 1)                        # last column zero

    h = jnp.arange(Hs)
    dhmat = ((h[None, :] == h[:, None] + 1).astype(jnp.float32)
             - (h[None, :] == h[:, None]).astype(jnp.float32))
    dhmat = dhmat * (h[:, None] < Hs - 1)                        # last row zero

    # Batch grouping: blocks big enough to amortize the ~0.35 us/step overhead,
    # small enough to bound VMEM and the in-kernel unroll.
    per_batch_bytes = C * H * W * 4
    G = int(max(1, min(B, _MAX_BATCH_PER_BLOCK,
                       _TARGET_BLOCK_BYTES // max(per_batch_bytes, 1))))
    while B % G:
        G -= 1
    nb = B // G

    # Compile-time normalizers (weight partials in-kernel, sum partials outside).
    coef_feat = -1.0 / float(B * Hs * Ws)
    coef_norm = LAMBDA_NORM / float(B * C * Hs * Ws)
    coef_h = (LAMBDA_TV * 2.0 / float(B * C * (Hs - 1) * Ws)) if Hs > 1 else 0.0
    coef_w = (LAMBDA_TV * 2.0 / float(B * C * Hs * (Ws - 1))) if Ws > 1 else 0.0

    # VMEM budget: double-buffered input block + per-(g,c) temporaries + consts.
    block_bytes = G * C * Hs * 2 * W * 4
    tmp_bytes = ((C + 8) * Hs * max(2 * W, 128) * 4
                 + 2 * (W * Ws + Ws * Ws + Hs * Hs) * 4)
    need = 2 * block_bytes + tmp_bytes + (1 << 20)
    try:
        phys_vmem = int(pltpu.get_tpu_info().vmem_capacity_bytes)
    except Exception:
        phys_vmem = 64 * 2**20                 # conservative (v7x per-TC VMEM)
    cap = max(16 * 2**20, (2 * phys_vmem) // 5)
    vmem_limit = int(min(max(16 * 2**20, need), cap))

    kernel = functools.partial(
        _visu_kernel, G=G, C=C, W=W, Hs=Hs, Ws=Ws,
        coef_feat=coef_feat, coef_norm=coef_norm, coef_h=coef_h, coef_w=coef_w)

    out = pl.pallas_call(
        kernel,
        out_shape=jax.ShapeDtypeStruct((nb, 1, 128), jnp.float32),
        grid=(nb,),
        in_specs=[
            pl.BlockSpec(memory_space=pltpu.MemorySpace.SMEM),        # conv params
            pl.BlockSpec((W, Ws), lambda i: (0, 0)),                  # pool matrix
            pl.BlockSpec((Ws, Ws), lambda i: (0, 0)),                 # TV-W diff
            pl.BlockSpec((Hs, Hs), lambda i: (0, 0)),                 # TV-H diff
            pl.BlockSpec((G, C, Hs, 2 * W), lambda i: (i, 0, 0, 0)),  # raw noise
        ],
        out_specs=pl.BlockSpec((1, 1, 128), lambda i: (i, 0, 0)),
        compiler_params=pltpu.CompilerParams(
            dimension_semantics=("parallel",),
            vmem_limit_bytes=vmem_limit),
        cost_estimate=pl.CostEstimate(
            flops=int(2 * B * C * Hs * Ws * (W + Ws + Hs) + 30 * B * C * Hs * Ws),
            transcendentals=int(B * C * Hs * Ws),
            bytes_accessed=int(B * C * H * W * 4
                               + (2 * (C + 1) + W * Ws + Ws * Ws + Hs * Hs) * 4
                               + nb * 128 * 4)),
    )(params, pmat, dwmat, dhmat, x2)

    # Final reduction over per-block partials.
    return jnp.sum(out[:, 0, 0])


def visu_forward_ref(noise_nchw, w, b):
    """Pure-JAX reference for correctness checking."""
    B, C, H, W = noise_nchw.shape
    x = noise_nchw.reshape(B, C, H // 2, 2, W // 2, 2).mean(axis=(3, 5))
    xs = jax.nn.sigmoid(x)                                        # (B, C, Hs, Ws)
    feat = jnp.einsum('bchw,cf->bfhw', xs, w) + b[None, :, None, None]
    feat = jnp.maximum(feat, 0.0)
    loss = -(feat[:, TARGET_CHANNELS[0]].mean() + feat[:, TARGET_CHANNELS[1]].mean())
    _, _, Hs, Ws = xs.shape
    h_tv = ((xs[:, :, 1:, :] - xs[:, :, :-1, :]) ** 2).sum()
    w_tv = ((xs[:, :, :, 1:] - xs[:, :, :, :-1]) ** 2).sum()
    tv = 2.0 * (h_tv / (C * (Hs - 1) * Ws) + w_tv / (C * Hs * (Ws - 1))) / B
    img_norm = (xs ** 2).mean()
    return loss + LAMBDA_TV * tv + LAMBDA_NORM * img_norm


if __name__ == "__main__":
    # feature_layer = Conv2d(3, 32, kernel_size=1) + ReLU; deterministic init.
    C_IN, F_OUT = 3, 32
    key = jax.random.PRNGKey(0)
    k_img, k_w, k_b = jax.random.split(key, 3)
    w = jax.random.normal(k_w, (C_IN, F_OUT), dtype=jnp.float32) * 0.1
    b = jax.random.normal(k_b, (F_OUT,), dtype=jnp.float32) * 0.01

    # Example input: batch=2, channels=3 (RGB), spatial=16x16.
    noise_image = jax.random.normal(k_img, (2, 3, 16, 16), dtype=jnp.float32)

    out = jax.block_until_ready(visu_forward(noise_image, w, b))
    ref = jax.block_until_ready(visu_forward_ref(noise_image, w, b))
    # Tolerance covers possible bf16-pass MXU rounding of the fused-pool matmul
    # at default precision (everything else is exact-f32 VPU/EUP work).
    assert jnp.allclose(out, ref, rtol=2e-3, atol=2e-3), (out, ref)
    print("KERNEL_OK")
</pallas_src>

<mosaic_0001>
module attributes {stable_mosaic.version = 11 : i64} {
  func.func @_visu_kernel(%arg0: i32, %arg1: memref<8xf32, #tpu.memory_space<smem>>, %arg2: memref<16x8xf32, #tpu.memory_space<vmem>>, %arg3: memref<8x8xf32, #tpu.memory_space<vmem>>, %arg4: memref<8x8xf32, #tpu.memory_space<vmem>>, %arg5: memref<2x3x8x32xf32, #tpu.memory_space<vmem>>, %arg6: memref<1x1x128xf32, #tpu.memory_space<vmem>>) attributes {dimension_semantics = [#tpu.dimension_semantics<parallel>], iteration_bounds = array<i64: 1>, scalar_prefetch = 0 : i64, scratch_operands = 0 : i64, tpu.core_type = #tpu.core_type<tc>, window_params = [{transform_indices = @transform_0, window_bounds = array<i64: 8>}, {pipeline_mode = #tpu.pipeline_mode<synchronous>, transform_indices = @transform_1, window_bounds = array<i64: 16, 8>}, {pipeline_mode = #tpu.pipeline_mode<synchronous>, transform_indices = @transform_2, window_bounds = array<i64: 8, 8>}, {pipeline_mode = #tpu.pipeline_mode<synchronous>, transform_indices = @transform_3, window_bounds = array<i64: 8, 8>}, {transform_indices = @transform_4, window_bounds = array<i64: 2, 3, 8, 32>}, {transform_indices = @transform_5, window_bounds = array<i64: 1, 1, 128>}]} {
    %c0 = arith.constant 0 : index
    %c0_0 = arith.constant 0 : index
    %0 = vector.load %arg2[%c0, %c0_0] : memref<16x8xf32, #tpu.memory_space<vmem>>, vector<16x8xf32>
    %c0_1 = arith.constant 0 : index
    %c0_2 = arith.constant 0 : index
    %1 = vector.load %arg3[%c0_1, %c0_2] : memref<8x8xf32, #tpu.memory_space<vmem>>, vector<8x8xf32>
    %c0_3 = arith.constant 0 : index
    %c0_4 = arith.constant 0 : index
    %2 = vector.load %arg4[%c0_3, %c0_4] : memref<8x8xf32, #tpu.memory_space<vmem>>, vector<8x8xf32>
    %cst = arith.constant 0.000000e+00 : f32
    %3 = vector.broadcast %cst : f32 to vector<8x8xf32>
    %c0_5 = arith.constant 0 : index
    %c0_6 = arith.constant 0 : index
    %c0_7 = arith.constant 0 : index
    %c0_8 = arith.constant 0 : index
    %4 = vector.load %arg5[%c0_5, %c0_6, %c0_7, %c0_8] : memref<2x3x8x32xf32, #tpu.memory_space<vmem>>, vector<1x1x8x32xf32>
    %5 = vector.shape_cast %4 : vector<1x1x8x32xf32> to vector<8x32xf32>
    %6 = vector.extract_strided_slice %5 {offsets = [0, 0], sizes = [8, 16], strides = [1, 1]} : vector<8x32xf32> to vector<8x16xf32>
    %7 = vector.extract_strided_slice %5 {offsets = [0, 16], sizes = [8, 16], strides = [1, 1]} : vector<8x32xf32> to vector<8x16xf32>
    %8 = arith.addf %6, %7 : vector<8x16xf32>
    %cst_9 = arith.constant dense<0.000000e+00> : vector<8x8xf32>
    %9 = tpu.matmul %8, %0, %cst_9 {dimension_numbers = #tpu.dot_dimension_numbers<[1], [0], [0], [1], [0, 0, 1, 1], [], []>} : vector<8x16xf32>, vector<16x8xf32>, vector<8x8xf32> -> vector<8x8xf32>
    %cst_10 = arith.constant 5.000000e-01 : f32
    %10 = vector.broadcast %cst_10 : f32 to vector<8x8xf32>
    %11 = arith.mulf %10, %9 : vector<8x8xf32>
    %12 = math.tanh %11 : vector<8x8xf32>
    %cst_11 = arith.constant 5.000000e-01 : f32
    %13 = vector.broadcast %cst_11 : f32 to vector<8x8xf32>
    %14 = arith.mulf %13, %12 : vector<8x8xf32>
    %cst_12 = arith.constant 5.000000e-01 : f32
    %15 = vector.broadcast %cst_12 : f32 to vector<8x8xf32>
    %16 = arith.addf %14, %15 : vector<8x8xf32>
    %17 = arith.mulf %16, %16 : vector<8x8xf32>
    %cst_13 = arith.constant 0.260416657 : f32
    %18 = vector.broadcast %cst_13 : f32 to vector<8x8xf32>
    %19 = arith.mulf %18, %17 : vector<8x8xf32>
    %20 = arith.addf %3, %19 : vector<8x8xf32>
    %cst_14 = arith.constant dense<0.000000e+00> : vector<8x8xf32>
    %21 = tpu.matmul %16, %1, %cst_14 {dimension_numbers = #tpu.dot_dimension_numbers<[1], [0], [0], [1], [0, 0, 1, 1], [], []>} : vector<8x8xf32>, vector<8x8xf32>, vector<8x8xf32> -> vector<8x8xf32>
    %22 = arith.mulf %21, %21 : vector<8x8xf32>
    %cst_15 = arith.constant 5.95238089E-6 : f32
    %23 = vector.broadcast %cst_15 : f32 to vector<8x8xf32>
    %24 = arith.mulf %23, %22 : vector<8x8xf32>
    %25 = arith.addf %20, %24 : vector<8x8xf32>
    %cst_16 = arith.constant dense<0.000000e+00> : vector<8x8xf32>
    %26 = tpu.matmul %2, %16, %cst_16 {dimension_numbers = #tpu.dot_dimension_numbers<[1], [0], [0], [1], [0, 0, 1, 1], [], []>} : vector<8x8xf32>, vector<8x8xf32>, vector<8x8xf32> -> vector<8x8xf32>
    %27 = arith.mulf %26, %26 : vector<8x8xf32>
    %cst_17 = arith.constant 5.95238089E-6 : f32
    %28 = vector.broadcast %cst_17 : f32 to vector<8x8xf32>
    %29 = arith.mulf %28, %27 : vector<8x8xf32>
    %30 = arith.addf %25, %29 : vector<8x8xf32>
    %c0_18 = arith.constant 0 : index
    %c1 = arith.constant 1 : index
    %c0_19 = arith.constant 0 : index
    %c0_20 = arith.constant 0 : index
    %31 = vector.load %arg5[%c0_18, %c1, %c0_19, %c0_20] : memref<2x3x8x32xf32, #tpu.memory_space<vmem>>, vector<1x1x8x32xf32>
    %32 = vector.shape_cast %31 : vector<1x1x8x32xf32> to vector<8x32xf32>
    %33 = vector.extract_strided_slice %32 {offsets = [0, 0], sizes = [8, 16], strides = [1, 1]} : vector<8x32xf32> to vector<8x16xf32>
    %34 = vector.extract_strided_slice %32 {offsets = [0, 16], sizes = [8, 16], strides = [1, 1]} : vector<8x32xf32> to vector<8x16xf32>
    %35 = arith.addf %33, %34 : vector<8x16xf32>
    %cst_21 = arith.constant dense<0.000000e+00> : vector<8x8xf32>
    %36 = tpu.matmul %35, %0, %cst_21 {dimension_numbers = #tpu.dot_dimension_numbers<[1], [0], [0], [1], [0, 0, 1, 1], [], []>} : vector<8x16xf32>, vector<16x8xf32>, vector<8x8xf32> -> vector<8x8xf32>
    %cst_22 = arith.constant 5.000000e-01 : f32
    %37 = vector.broadcast %cst_22 : f32 to vector<8x8xf32>
    %38 = arith.mulf %37, %36 : vector<8x8xf32>
    %39 = math.tanh %38 : vector<8x8xf32>
    %cst_23 = arith.constant 5.000000e-01 : f32
    %40 = vector.broadcast %cst_23 : f32 to vector<8x8xf32>
    %41 = arith.mulf %40, %39 : vector<8x8xf32>
    %cst_24 = arith.constant 5.000000e-01 : f32
    %42 = vector.broadcast %cst_24 : f32 to vector<8x8xf32>
    %43 = arith.addf %41, %42 : vector<8x8xf32>
    %44 = arith.mulf %43, %43 : vector<8x8xf32>
    %cst_25 = arith.constant 0.260416657 : f32
    %45 = vector.broadcast %cst_25 : f32 to vector<8x8xf32>
    %46 = arith.mulf %45, %44 : vector<8x8xf32>
    %47 = arith.addf %30, %46 : vector<8x8xf32>
    %cst_26 = arith.constant dense<0.000000e+00> : vector<8x8xf32>
    %48 = tpu.matmul %43, %1, %cst_26 {dimension_numbers = #tpu.dot_dimension_numbers<[1], [0], [0], [1], [0, 0, 1, 1], [], []>} : vector<8x8xf32>, vector<8x8xf32>, vector<8x8xf32> -> vector<8x8xf32>
    %49 = arith.mulf %48, %48 : vector<8x8xf32>
    %cst_27 = arith.constant 5.95238089E-6 : f32
    %50 = vector.broadcast %cst_27 : f32 to vector<8x8xf32>
    %51 = arith.mulf %50, %49 : vector<8x8xf32>
    %52 = arith.addf %47, %51 : vector<8x8xf32>
    %cst_28 = arith.constant dense<0.000000e+00> : vector<8x8xf32>
    %53 = tpu.matmul %2, %43, %cst_28 {dimension_numbers = #tpu.dot_dimension_numbers<[1], [0], [0], [1], [0, 0, 1, 1], [], []>} : vector<8x8xf32>, vector<8x8xf32>, vector<8x8xf32> -> vector<8x8xf32>
    %54 = arith.mulf %53, %53 : vector<8x8xf32>
    %cst_29 = arith.constant 5.95238089E-6 : f32
    %55 = vector.broadcast %cst_29 : f32 to vector<8x8xf32>
    %56 = arith.mulf %55, %54 : vector<8x8xf32>
    %57 = arith.addf %52, %56 : vector<8x8xf32>
    %c0_30 = arith.constant 0 : index
    %c2 = arith.constant 2 : index
    %c0_31 = arith.constant 0 : index
    %c0_32 = arith.constant 0 : index
    %58 = vector.load %arg5[%c0_30, %c2, %c0_31, %c0_32] : memref<2x3x8x32xf32, #tpu.memory_space<vmem>>, vector<1x1x8x32xf32>
    %59 = vector.shape_cast %58 : vector<1x1x8x32xf32> to vector<8x32xf32>
    %60 = vector.extract_strided_slice %59 {offsets = [0, 0], sizes = [8, 16], strides = [1, 1]} : vector<8x32xf32> to vector<8x16xf32>
    %61 = vector.extract_strided_slice %59 {offsets = [0, 16], sizes = [8, 16], strides = [1, 1]} : vector<8x32xf32> to vector<8x16xf32>
    %62 = arith.addf %60, %61 : vector<8x16xf32>
    %cst_33 = arith.constant dense<0.000000e+00> : vector<8x8xf32>
    %63 = tpu.matmul %62, %0, %cst_33 {dimension_numbers = #tpu.dot_dimension_numbers<[1], [0], [0], [1], [0, 0, 1, 1], [], []>} : vector<8x16xf32>, vector<16x8xf32>, vector<8x8xf32> -> vector<8x8xf32>
    %cst_34 = arith.constant 5.000000e-01 : f32
    %64 = vector.broadcast %cst_34 : f32 to vector<8x8xf32>
    %65 = arith.mulf %64, %63 : vector<8x8xf32>
    %66 = math.tanh %65 : vector<8x8xf32>
    %cst_35 = arith.constant 5.000000e-01 : f32
    %67 = vector.broadcast %cst_35 : f32 to vector<8x8xf32>
    %68 = arith.mulf %67, %66 : vector<8x8xf32>
    %cst_36 = arith.constant 5.000000e-01 : f32
    %69 = vector.broadcast %cst_36 : f32 to vector<8x8xf32>
    %70 = arith.addf %68, %69 : vector<8x8xf32>
    %71 = arith.mulf %70, %70 : vector<8x8xf32>
    %cst_37 = arith.constant 0.260416657 : f32
    %72 = vector.broadcast %cst_37 : f32 to vector<8x8xf32>
    %73 = arith.mulf %72, %71 : vector<8x8xf32>
    %74 = arith.addf %57, %73 : vector<8x8xf32>
    %cst_38 = arith.constant dense<0.000000e+00> : vector<8x8xf32>
    %75 = tpu.matmul %70, %1, %cst_38 {dimension_numbers = #tpu.dot_dimension_numbers<[1], [0], [0], [1], [0, 0, 1, 1], [], []>} : vector<8x8xf32>, vector<8x8xf32>, vector<8x8xf32> -> vector<8x8xf32>
    %76 = arith.mulf %75, %75 : vector<8x8xf32>
    %cst_39 = arith.constant 5.95238089E-6 : f32
    %77 = vector.broadcast %cst_39 : f32 to vector<8x8xf32>
    %78 = arith.mulf %77, %76 : vector<8x8xf32>
    %79 = arith.addf %74, %78 : vector<8x8xf32>
    %cst_40 = arith.constant dense<0.000000e+00> : vector<8x8xf32>
    %80 = tpu.matmul %2, %70, %cst_40 {dimension_numbers = #tpu.dot_dimension_numbers<[1], [0], [0], [1], [0, 0, 1, 1], [], []>} : vector<8x8xf32>, vector<8x8xf32>, vector<8x8xf32> -> vector<8x8xf32>
    %81 = arith.mulf %80, %80 : vector<8x8xf32>
    %cst_41 = arith.constant 5.95238089E-6 : f32
    %82 = vector.broadcast %cst_41 : f32 to vector<8x8xf32>
    %83 = arith.mulf %82, %81 : vector<8x8xf32>
    %84 = arith.addf %79, %83 : vector<8x8xf32>
    %c3 = arith.constant 3 : index
    %85 = memref.load %arg1[%c3] : memref<8xf32, #tpu.memory_space<smem>>
    %c0_42 = arith.constant 0 : index
    %86 = memref.load %arg1[%c0_42] : memref<8xf32, #tpu.memory_space<smem>>
    %87 = vector.broadcast %86 : f32 to vector<8x8xf32>
    %88 = arith.mulf %87, %16 : vector<8x8xf32>
    %89 = vector.broadcast %85 : f32 to vector<8x8xf32>
    %90 = arith.addf %89, %88 : vector<8x8xf32>
    %c1_43 = arith.constant 1 : index
    %91 = memref.load %arg1[%c1_43] : memref<8xf32, #tpu.memory_space<smem>>
    %92 = vector.broadcast %91 : f32 to vector<8x8xf32>
    %93 = arith.mulf %92, %43 : vector<8x8xf32>
    %94 = arith.addf %90, %93 : vector<8x8xf32>
    %c2_44 = arith.constant 2 : index
    %95 = memref.load %arg1[%c2_44] : memref<8xf32, #tpu.memory_space<smem>>
    %96 = vector.broadcast %95 : f32 to vector<8x8xf32>
    %97 = arith.mulf %96, %70 : vector<8x8xf32>
    %98 = arith.addf %94, %97 : vector<8x8xf32>
    %cst_45 = arith.constant 0.000000e+00 : f32
    %99 = vector.broadcast %cst_45 : f32 to vector<8x8xf32>
    %100 = arith.maximumf %98, %99 : vector<8x8xf32>
    %cst_46 = arith.constant -7.812500e-03 : f32
    %101 = vector.broadcast %cst_46 : f32 to vector<8x8xf32>
    %102 = arith.mulf %101, %100 : vector<8x8xf32>
    %103 = arith.addf %84, %102 : vector<8x8xf32>
    %c7 = arith.constant 7 : index
    %104 = memref.load %arg1[%c7] : memref<8xf32, #tpu.memory_space<smem>>
    %c4 = arith.constant 4 : index
    %105 = memref.load %arg1[%c4] : memref<8xf32, #tpu.memory_space<smem>>
    %106 = vector.broadcast %105 : f32 to vector<8x8xf32>
    %107 = arith.mulf %106, %16 : vector<8x8xf32>
    %108 = vector.broadcast %104 : f32 to vector<8x8xf32>
    %109 = arith.addf %108, %107 : vector<8x8xf32>
    %c5 = arith.constant 5 : index
    %110 = memref.load %arg1[%c5] : memref<8xf32, #tpu.memory_space<smem>>
    %111 = vector.broadcast %110 : f32 to vector<8x8xf32>
    %112 = arith.mulf %111, %43 : vector<8x8xf32>
    %113 = arith.addf %109, %112 : vector<8x8xf32>
    %c6 = arith.constant 6 : index
    %114 = memref.load %arg1[%c6] : memref<8xf32, #tpu.memory_space<smem>>
    %115 = vector.broadcast %114 : f32 to vector<8x8xf32>
    %116 = arith.mulf %115, %70 : vector<8x8xf32>
    %117 = arith.addf %113, %116 : vector<8x8xf32>
    %cst_47 = arith.constant 0.000000e+00 : f32
    %118 = vector.broadcast %cst_47 : f32 to vector<8x8xf32>
    %119 = arith.maximumf %117, %118 : vector<8x8xf32>
    %cst_48 = arith.constant -7.812500e-03 : f32
    %120 = vector.broadcast %cst_48 : f32 to vector<8x8xf32>
    %121 = arith.mulf %120, %119 : vector<8x8xf32>
    %122 = arith.addf %103, %121 : vector<8x8xf32>
    %c1_49 = arith.constant 1 : index
    %c0_50 = arith.constant 0 : index
    %c0_51 = arith.constant 0 : index
    %c0_52 = arith.constant 0 : index
    %123 = vector.load %arg5[%c1_49, %c0_50, %c0_51, %c0_52] : memref<2x3x8x32xf32, #tpu.memory_space<vmem>>, vector<1x1x8x32xf32>
    %124 = vector.shape_cast %123 : vector<1x1x8x32xf32> to vector<8x32xf32>
    %125 = vector.extract_strided_slice %124 {offsets = [0, 0], sizes = [8, 16], strides = [1, 1]} : vector<8x32xf32> to vector<8x16xf32>
    %126 = vector.extract_strided_slice %124 {offsets = [0, 16], sizes = [8, 16], strides = [1, 1]} : vector<8x32xf32> to vector<8x16xf32>
    %127 = arith.addf %125, %126 : vector<8x16xf32>
    %cst_53 = arith.constant dense<0.000000e+00> : vector<8x8xf32>
    %128 = tpu.matmul %127, %0, %cst_53 {dimension_numbers = #tpu.dot_dimension_numbers<[1], [0], [0], [1], [0, 0, 1, 1], [], []>} : vector<8x16xf32>, vector<16x8xf32>, vector<8x8xf32> -> vector<8x8xf32>
    %cst_54 = arith.constant 5.000000e-01 : f32
    %129 = vector.broadcast %cst_54 : f32 to vector<8x8xf32>
    %130 = arith.mulf %129, %128 : vector<8x8xf32>
    %131 = math.tanh %130 : vector<8x8xf32>
    %cst_55 = arith.constant 5.000000e-01 : f32
    %132 = vector.broadcast %cst_55 : f32 to vector<8x8xf32>
    %133 = arith.mulf %132, %131 : vector<8x8xf32>
    %cst_56 = arith.constant 5.000000e-01 : f32
    %134 = vector.broadcast %cst_56 : f32 to vector<8x8xf32>
    %135 = arith.addf %133, %134 : vector<8x8xf32>
    %136 = arith.mulf %135, %135 : vector<8x8xf32>
    %cst_57 = arith.constant 0.260416657 : f32
    %137 = vector.broadcast %cst_57 : f32 to vector<8x8xf32>
    %138 = arith.mulf %137, %136 : vector<8x8xf32>
    %139 = arith.addf %122, %138 : vector<8x8xf32>
    %cst_58 = arith.constant dense<0.000000e+00> : vector<8x8xf32>
    %140 = tpu.matmul %135, %1, %cst_58 {dimension_numbers = #tpu.dot_dimension_numbers<[1], [0], [0], [1], [0, 0, 1, 1], [], []>} : vector<8x8xf32>, vector<8x8xf32>, vector<8x8xf32> -> vector<8x8xf32>
    %141 = arith.mulf %140, %140 : vector<8x8xf32>
    %cst_59 = arith.constant 5.95238089E-6 : f32
    %142 = vector.broadcast %cst_59 : f32 to vector<8x8xf32>
    %143 = arith.mulf %142, %141 : vector<8x8xf32>
    %144 = arith.addf %139, %143 : vector<8x8xf32>
    %cst_60 = arith.constant dense<0.000000e+00> : vector<8x8xf32>
    %145 = tpu.matmul %2, %135, %cst_60 {dimension_numbers = #tpu.dot_dimension_numbers<[1], [0], [0], [1], [0, 0, 1, 1], [], []>} : vector<8x8xf32>, vector<8x8xf32>, vector<8x8xf32> -> vector<8x8xf32>
    %146 = arith.mulf %145, %145 : vector<8x8xf32>
    %cst_61 = arith.constant 5.95238089E-6 : f32
    %147 = vector.broadcast %cst_61 : f32 to vector<8x8xf32>
    %148 = arith.mulf %147, %146 : vector<8x8xf32>
    %149 = arith.addf %144, %148 : vector<8x8xf32>
    %c1_62 = arith.constant 1 : index
    %c1_63 = arith.constant 1 : index
    %c0_64 = arith.constant 0 : index
    %c0_65 = arith.constant 0 : index
    %150 = vector.load %arg5[%c1_62, %c1_63, %c0_64, %c0_65] : memref<2x3x8x32xf32, #tpu.memory_space<vmem>>, vector<1x1x8x32xf32>
    %151 = vector.shape_cast %150 : vector<1x1x8x32xf32> to vector<8x32xf32>
    %152 = vector.extract_strided_slice %151 {offsets = [0, 0], sizes = [8, 16], strides = [1, 1]} : vector<8x32xf32> to vector<8x16xf32>
    %153 = vector.extract_strided_slice %151 {offsets = [0, 16], sizes = [8, 16], strides = [1, 1]} : vector<8x32xf32> to vector<8x16xf32>
    %154 = arith.addf %152, %153 : vector<8x16xf32>
    %cst_66 = arith.constant dense<0.000000e+00> : vector<8x8xf32>
    %155 = tpu.matmul %154, %0, %cst_66 {dimension_numbers = #tpu.dot_dimension_numbers<[1], [0], [0], [1], [0, 0, 1, 1], [], []>} : vector<8x16xf32>, vector<16x8xf32>, vector<8x8xf32> -> vector<8x8xf32>
    %cst_67 = arith.constant 5.000000e-01 : f32
    %156 = vector.broadcast %cst_67 : f32 to vector<8x8xf32>
    %157 = arith.mulf %156, %155 : vector<8x8xf32>
    %158 = math.tanh %157 : vector<8x8xf32>
    %cst_68 = arith.constant 5.000000e-01 : f32
    %159 = vector.broadcast %cst_68 : f32 to vector<8x8xf32>
    %160 = arith.mulf %159, %158 : vector<8x8xf32>
    %cst_69 = arith.constant 5.000000e-01 : f32
    %161 = vector.broadcast %cst_69 : f32 to vector<8x8xf32>
    %162 = arith.addf %160, %161 : vector<8x8xf32>
    %163 = arith.mulf %162, %162 : vector<8x8xf32>
    %cst_70 = arith.constant 0.260416657 : f32
    %164 = vector.broadcast %cst_70 : f32 to vector<8x8xf32>
    %165 = arith.mulf %164, %163 : vector<8x8xf32>
    %166 = arith.addf %149, %165 : vector<8x8xf32>
    %cst_71 = arith.constant dense<0.000000e+00> : vector<8x8xf32>
    %167 = tpu.matmul %162, %1, %cst_71 {dimension_numbers = #tpu.dot_dimension_numbers<[1], [0], [0], [1], [0, 0, 1, 1], [], []>} : vector<8x8xf32>, vector<8x8xf32>, vector<8x8xf32> -> vector<8x8xf32>
    %168 = arith.mulf %167, %167 : vector<8x8xf32>
    %cst_72 = arith.constant 5.95238089E-6 : f32
    %169 = vector.broadcast %cst_72 : f32 to vector<8x8xf32>
    %170 = arith.mulf %169, %168 : vector<8x8xf32>
    %171 = arith.addf %166, %170 : vector<8x8xf32>
    %cst_73 = arith.constant dense<0.000000e+00> : vector<8x8xf32>
    %172 = tpu.matmul %2, %162, %cst_73 {dimension_numbers = #tpu.dot_dimension_numbers<[1], [0], [0], [1], [0, 0, 1, 1], [], []>} : vector<8x8xf32>, vector<8x8xf32>, vector<8x8xf32> -> vector<8x8xf32>
    %173 = arith.mulf %172, %172 : vector<8x8xf32>
    %cst_74 = arith.constant 5.95238089E-6 : f32
    %174 = vector.broadcast %cst_74 : f32 to vector<8x8xf32>
    %175 = arith.mulf %174, %173 : vector<8x8xf32>
    %176 = arith.addf %171, %175 : vector<8x8xf32>
    %c1_75 = arith.constant 1 : index
    %c2_76 = arith.constant 2 : index
    %c0_77 = arith.constant 0 : index
    %c0_78 = arith.constant 0 : index
    %177 = vector.load %arg5[%c1_75, %c2_76, %c0_77, %c0_78] : memref<2x3x8x32xf32, #tpu.memory_space<vmem>>, vector<1x1x8x32xf32>
    %178 = vector.shape_cast %177 : vector<1x1x8x32xf32> to vector<8x32xf32>
    %179 = vector.extract_strided_slice %178 {offsets = [0, 0], sizes = [8, 16], strides = [1, 1]} : vector<8x32xf32> to vector<8x16xf32>
    %180 = vector.extract_strided_slice %178 {offsets = [0, 16], sizes = [8, 16], strides = [1, 1]} : vector<8x32xf32> to vector<8x16xf32>
    %181 = arith.addf %179, %180 : vector<8x16xf32>
    %cst_79 = arith.constant dense<0.000000e+00> : vector<8x8xf32>
    %182 = tpu.matmul %181, %0, %cst_79 {dimension_numbers = #tpu.dot_dimension_numbers<[1], [0], [0], [1], [0, 0, 1, 1], [], []>} : vector<8x16xf32>, vector<16x8xf32>, vector<8x8xf32> -> vector<8x8xf32>
    %cst_80 = arith.constant 5.000000e-01 : f32
    %183 = vector.broadcast %cst_80 : f32 to vector<8x8xf32>
    %184 = arith.mulf %183, %182 : vector<8x8xf32>
    %185 = math.tanh %184 : vector<8x8xf32>
    %cst_81 = arith.constant 5.000000e-01 : f32
    %186 = vector.broadcast %cst_81 : f32 to vector<8x8xf32>
    %187 = arith.mulf %186, %185 : vector<8x8xf32>
    %cst_82 = arith.constant 5.000000e-01 : f32
    %188 = vector.broadcast %cst_82 : f32 to vector<8x8xf32>
    %189 = arith.addf %187, %188 : vector<8x8xf32>
    %190 = arith.mulf %189, %189 : vector<8x8xf32>
    %cst_83 = arith.constant 0.260416657 : f32
    %191 = vector.broadcast %cst_83 : f32 to vector<8x8xf32>
    %192 = arith.mulf %191, %190 : vector<8x8xf32>
    %193 = arith.addf %176, %192 : vector<8x8xf32>
    %cst_84 = arith.constant dense<0.000000e+00> : vector<8x8xf32>
    %194 = tpu.matmul %189, %1, %cst_84 {dimension_numbers = #tpu.dot_dimension_numbers<[1], [0], [0], [1], [0, 0, 1, 1], [], []>} : vector<8x8xf32>, vector<8x8xf32>, vector<8x8xf32> -> vector<8x8xf32>
    %195 = arith.mulf %194, %194 : vector<8x8xf32>
    %cst_85 = arith.constant 5.95238089E-6 : f32
    %196 = vector.broadcast %cst_85 : f32 to vector<8x8xf32>
    %197 = arith.mulf %196, %195 : vector<8x8xf32>
    %198 = arith.addf %193, %197 : vector<8x8xf32>
    %cst_86 = arith.constant dense<0.000000e+00> : vector<8x8xf32>
    %199 = tpu.matmul %2, %189, %cst_86 {dimension_numbers = #tpu.dot_dimension_numbers<[1], [0], [0], [1], [0, 0, 1, 1], [], []>} : vector<8x8xf32>, vector<8x8xf32>, vector<8x8xf32> -> vector<8x8xf32>
    %200 = arith.mulf %199, %199 : vector<8x8xf32>
    %cst_87 = arith.constant 5.95238089E-6 : f32
    %201 = vector.broadcast %cst_87 : f32 to vector<8x8xf32>
    %202 = arith.mulf %201, %200 : vector<8x8xf32>
    %203 = arith.addf %198, %202 : vector<8x8xf32>
    %c3_88 = arith.constant 3 : index
    %204 = memref.load %arg1[%c3_88] : memref<8xf32, #tpu.memory_space<smem>>
    %c0_89 = arith.constant 0 : index
    %205 = memref.load %arg1[%c0_89] : memref<8xf32, #tpu.memory_space<smem>>
    %206 = vector.broadcast %205 : f32 to vector<8x8xf32>
    %207 = arith.mulf %206, %135 : vector<8x8xf32>
    %208 = vector.broadcast %204 : f32 to vector<8x8xf32>
    %209 = arith.addf %208, %207 : vector<8x8xf32>
    %c1_90 = arith.constant 1 : index
    %210 = memref.load %arg1[%c1_90] : memref<8xf32, #tpu.memory_space<smem>>
    %211 = vector.broadcast %210 : f32 to vector<8x8xf32>
    %212 = arith.mulf %211, %162 : vector<8x8xf32>
    %213 = arith.addf %209, %212 : vector<8x8xf32>
    %c2_91 = arith.constant 2 : index
    %214 = memref.load %arg1[%c2_91] : memref<8xf32, #tpu.memory_space<smem>>
    %215 = vector.broadcast %214 : f32 to vector<8x8xf32>
    %216 = arith.mulf %215, %189 : vector<8x8xf32>
    %217 = arith.addf %213, %216 : vector<8x8xf32>
    %cst_92 = arith.constant 0.000000e+00 : f32
    %218 = vector.broadcast %cst_92 : f32 to vector<8x8xf32>
    %219 = arith.maximumf %217, %218 : vector<8x8xf32>
    %cst_93 = arith.constant -7.812500e-03 : f32
    %220 = vector.broadcast %cst_93 : f32 to vector<8x8xf32>
    %221 = arith.mulf %220, %219 : vector<8x8xf32>
    %222 = arith.addf %203, %221 : vector<8x8xf32>
    %c7_94 = arith.constant 7 : index
    %223 = memref.load %arg1[%c7_94] : memref<8xf32, #tpu.memory_space<smem>>
    %c4_95 = arith.constant 4 : index
    %224 = memref.load %arg1[%c4_95] : memref<8xf32, #tpu.memory_space<smem>>
    %225 = vector.broadcast %224 : f32 to vector<8x8xf32>
    %226 = arith.mulf %225, %135 : vector<8x8xf32>
    %227 = vector.broadcast %223 : f32 to vector<8x8xf32>
    %228 = arith.addf %227, %226 : vector<8x8xf32>
    %c5_96 = arith.constant 5 : index
    %229 = memref.load %arg1[%c5_96] : memref<8xf32, #tpu.memory_space<smem>>
    %230 = vector.broadcast %229 : f32 to vector<8x8xf32>
    %231 = arith.mulf %230, %162 : vector<8x8xf32>
    %232 = arith.addf %228, %231 : vector<8x8xf32>
    %c6_97 = arith.constant 6 : index
    %233 = memref.load %arg1[%c6_97] : memref<8xf32, #tpu.memory_space<smem>>
    %234 = vector.broadcast %233 : f32 to vector<8x8xf32>
    %235 = arith.mulf %234, %189 : vector<8x8xf32>
    %236 = arith.addf %232, %235 : vector<8x8xf32>
    %cst_98 = arith.constant 0.000000e+00 : f32
    %237 = vector.broadcast %cst_98 : f32 to vector<8x8xf32>
    %238 = arith.maximumf %236, %237 : vector<8x8xf32>
    %cst_99 = arith.constant -7.812500e-03 : f32
    %239 = vector.broadcast %cst_99 : f32 to vector<8x8xf32>
    %240 = arith.mulf %239, %238 : vector<8x8xf32>
    %241 = arith.addf %222, %240 : vector<8x8xf32>
    %242 = vector.shape_cast %241 : vector<8x8xf32> to vector<1x8x8xf32>
    %cst_100 = arith.constant dense<0.000000e+00> : vector<1xf32>
    %243 = vector.multi_reduction <add>, %242, %cst_100 [1, 2] : vector<1x8x8xf32> to vector<1xf32>
    %244 = vector.shape_cast %243 : vector<1xf32> to vector<1x1x1xf32>
    %245 = vector.extract %244[0, 0, 0] : f32 from vector<1x1x1xf32>
    %246 = vector.broadcast %245 : f32 to vector<1x1x128xf32>
    %c0_101 = arith.constant 0 : index
    %c0_102 = arith.constant 0 : index
    %c0_103 = arith.constant 0 : index
    %247 = vector.load %arg6[%c0_101, %c0_102, %c0_103] : memref<1x1x128xf32, #tpu.memory_space<vmem>>, vector<1x1x128xf32>
    tpu.vector_store %arg6[%c0_101, %c0_102, %c0_103], %246 {strides = array<i32>} : memref<1x1x128xf32, #tpu.memory_space<vmem>>, vector<1x1x128xf32>,
    return
  }
  func.func @transform_0(%arg0: i32) -> i32 {
    %c0_i32 = arith.constant 0 : i32
    %c0_i32_0 = arith.constant 0 : i32
    return %c0_i32 : i32
  }
  func.func @transform_1(%arg0: i32) -> (i32, i32) {
    %c0_i32 = arith.constant 0 : i32
    %c0_i32_0 = arith.constant 0 : i32
    %c0_i32_1 = arith.constant 0 : i32
    return %c0_i32, %c0_i32_0 : i32, i32
  }
  func.func @transform_2(%arg0: i32) -> (i32, i32) {
    %c0_i32 = arith.constant 0 : i32
    %c0_i32_0 = arith.constant 0 : i32
    %c0_i32_1 = arith.constant 0 : i32
    return %c0_i32, %c0_i32_0 : i32, i32
  }
  func.func @transform_3(%arg0: i32) -> (i32, i32) {
    %c0_i32 = arith.constant 0 : i32
    %c0_i32_0 = arith.constant 0 : i32
    %c0_i32_1 = arith.constant 0 : i32
    return %c0_i32, %c0_i32_0 : i32, i32
  }
  func.func @transform_4(%arg0: i32) -> (i32, i32, i32, i32) {
    %c0_i32 = arith.constant 0 : i32
    %c0_i32_0 = arith.constant 0 : i32
    %c0_i32_1 = arith.constant 0 : i32
    %c0_i32_2 = arith.constant 0 : i32
    return %arg0, %c0_i32, %c0_i32_0, %c0_i32_1 : i32, i32, i32, i32
  }
  func.func @transform_5(%arg0: i32) -> (i32, i32, i32) {
    %c0_i32 = arith.constant 0 : i32
    %c0_i32_0 = arith.constant 0 : i32
    %c0_i32_1 = arith.constant 0 : i32
    return %arg0, %c0_i32, %c0_i32_0 : i32, i32, i32
  }
}

</mosaic_0001>

<llo_original>
// kernel: tpu_custom_call.1
$region0: #{tpu_custom_call.1}
  #allocation0 [shape = 'u32[]', space=smem, size = 0x4, offset = 0x4, fixed_abs, tag = 'smem constant byte address 0x4 - core index']
  #allocation1 [shape = 'u32[144,128]{1,0:T(1,128)}', space=vmem, size = 0x12000, scoped, tag = 'internal scratch']
  %s0 = inlined_call_operand.vmem [shape: f32[8], index: 0, kind: input, shape index: {}]
  %s1 = inlined_call_operand.vmem [shape: f32[16,8], index: 1, kind: input, shape index: {}]
  %s2 = inlined_call_operand.vmem [shape: f32[8,8], index: 2, kind: input, shape index: {}]
  %s3 = inlined_call_operand.vmem [shape: f32[8,8], index: 3, kind: input, shape index: {}]
  %s4 = inlined_call_operand.hbm [shape: f32[2,3,8,32], index: 4, kind: input, shape index: {}]
  %s5 = inlined_call_operand.hbm [shape: f32[1,1,128], index: 5, kind: output, shape index: {}]
  %s6 = sld [smem:[#allocation0]]
  $region38: #{tpu_custom_call.1} parent=0
    _
  %s8 = ssub.s32 1, %s6
  %s9 = scalar_select 0, %s8, %s6
  $region1: #{tpu_custom_call.1} parent=0
    #allocation2 [shape = 'u8[512]{0}', space=smem, size = 0x200, scoped, tag = 'input window, operand 0, single buffered']
    #allocation3 [shape = 's32[1]{0}', space=sflag, size = 0x4, scoped, tag = 'scoped memory for tpu_custom_call.1']
    #allocation4 [shape = 's32[1]{0}', space=sflag, size = 0x4, scoped, tag = 'scoped memory for tpu_custom_call.1']
    #allocation5 [shape = 's32[1]{0}', space=sflag, size = 0x4, scoped, tag = 'scoped memory for tpu_custom_call.1']
    #allocation6 [shape = 'u8[24576]{0}', space=vmem, size = 0x6000, scoped, tag = 'input window, operand 4, single buffered']
    #allocation7 [shape = 'u8[512]{0}', space=vmem, size = 0x400, scoped, tag = 'output window, operand 0, single buffered']
    %10 = vsyncpa [#allocation5], 0
    %11 = vsyncpa [#allocation3], 0
    %12 = vsyncpa [#allocation4], 0
    // Predicated region
    $region2: #{tpu_custom_call.1} parent=1 // pred_check
      _
    $region3: #{tpu_custom_call.1} parent=1 // pred_check_branch
      %14 = sbr.rel (0) target = $region5
    $region4: #{tpu_custom_call.1} parent=1 // pred_region
      %s16 = ssub.s32 16, 16
      %17 = vsyncadd [#allocation5], %s16
      %s19 = sshll.u32 %s0, 4
      %s20 = int_to_ptr.vmem [resolvable:$true] %s19
      %22 = dma.vmem_to_smem %s20, 16, [#allocation2], [#allocation5]
    $region5: #{tpu_custom_call.1} parent=1 // pred_fallthru
      _
    // Predicated region
    $region6: #{tpu_custom_call.1} parent=1 // pred_check
      _
    $region7: #{tpu_custom_call.1} parent=1 // pred_check_branch
      %24 = sbr.rel (0) target = $region9
    $region8: #{tpu_custom_call.1} parent=1 // pred_region
      _
    $region9: #{tpu_custom_call.1} parent=1 // pred_fallthru
      _
    // Predicated region
    $region10: #{tpu_custom_call.1} parent=1 // pred_check
      _
    $region11: #{tpu_custom_call.1} parent=1 // pred_check_branch
      %26 = sbr.rel (0) target = $region13
    $region12: #{tpu_custom_call.1} parent=1 // pred_region
      _
    $region13: #{tpu_custom_call.1} parent=1 // pred_fallthru
      _
    // Predicated region
    $region14: #{tpu_custom_call.1} parent=1 // pred_check
      _
    $region15: #{tpu_custom_call.1} parent=1 // pred_check_branch
      %28 = sbr.rel (0) target = $region17
    $region16: #{tpu_custom_call.1} parent=1 // pred_region
      _
    $region17: #{tpu_custom_call.1} parent=1 // pred_fallthru
      _
    // Predicated region
    $region18: #{tpu_custom_call.1} parent=1 // pred_check
      _
    $region19: #{tpu_custom_call.1} parent=1 // pred_check_branch
      %30 = sbr.rel (0) target = $region21
    $region20: #{tpu_custom_call.1} parent=1 // pred_region
      %s32 = ssub.s32 768, 768
      %33 = vsyncadd [#allocation3], %s32
      %s34 = sshll.u32 [#allocation6], 4
      %s35 = int_to_ptr.vmem [resolvable:$true] %s34
      %40 = dma.hbm_to_vmem [thread:$0]  %s4, 768, %s35, [#allocation3], 128, 128, 8
    $region21: #{tpu_custom_call.1} parent=1 // pred_fallthru
      _
    // Predicated region
    $region22: #{tpu_custom_call.1} parent=1 // pred_check
      _
    $region23: #{tpu_custom_call.1} parent=1 // pred_check_branch
      %42 = sbr.rel (0) target = $region25
    $region24: #{tpu_custom_call.1} parent=1 // pred_region
      %43 = dma.done [#allocation5], 16
    $region25: #{tpu_custom_call.1} parent=1 // pred_fallthru
      _
    // Predicated region
    $region26: #{tpu_custom_call.1} parent=1 // pred_check
      _
    $region27: #{tpu_custom_call.1} parent=1 // pred_check_branch
      %45 = sbr.rel (0) target = $region29
    $region28: #{tpu_custom_call.1} parent=1 // pred_region
      %46 = dma.done [#allocation3], 768
    $region29: #{tpu_custom_call.1} parent=1 // pred_fallthru
      _
    %47 = sfence
    %v48 = vld [vmem:[%s1] sm:$0xff]
    %v49 = vld [vmem:[%s1 + $0x8] sm:$0xff]
    %v50 = vld [vmem:[%s2] sm:$0xff]
    %v51 = vld [vmem:[%s3] sm:$0xff]
    %v52 = vld [vmem:[#allocation6] sm:$0xff]
    %54 = vrot.lane.b32.xlu0 %v52, 112
    %v55 = vpop.permute.xlu0 %54
    %v57 = vadd.f32 %v52, %v55
    %vm58 = vcmask 130048
    %v60 = vsel %vm58, %v57, 0
    %62 = vmatprep.subr.mxu0 0.0
    %63 = vmatpush1.msra.mxu0 0.0
    %64 = vmatprep.subr.mxu0 0.0
    %65 = vmatpush1.msra.mxu0 0.0
    %66 = vmatprep.subr.mxu0 0.0
    %67 = vmatpush1.msra.mxu0 0.0
    %68 = vmatprep.subr.mxu0 0.0
    %69 = vmatpush1.msra.mxu0 0.0
    %70 = vmatprep.subr.mxu0 0.0
    %71 = vmatpush1.msra.mxu0 0.0
    %72 = vmatprep.subr.mxu0 0.0
    %73 = vmatpush1.msra.mxu0 0.0
    %74 = vmatprep.subr.mxu0 0.0
    %75 = vmatpush1.msra.mxu0 0.0
    %76 = vmatprep.subr.mxu0 0.0
    %77 = vmatpush1.msra.mxu0 0.0
    %78 = vmatprep.subr.mxu0 0.0
    %79 = vmatpush1.msra.mxu0 0.0
    %80 = vmatprep.subr.mxu0 0.0
    %81 = vmatpush1.msra.mxu0 0.0
    %82 = vmatprep.subr.mxu0 0.0
    %83 = vmatpush1.msra.mxu0 0.0
    %84 = vmatprep.subr.mxu0 0.0
    %85 = vmatpush1.msra.mxu0 0.0
    %86 = vmatprep.subr.mxu0 0.0
    %87 = vmatpush1.msra.mxu0 0.0
    %88 = vmatprep.subr.mxu0 0.0
    %89 = vmatpush1.msra.mxu0 0.0
    %90 = vmatprep.subr.mxu0 0.0
    %91 = vmatpush1.msra.mxu0 %v49
    %92 = vmatprep.subr.mxu0 0.0
    %93 = vmatpush1.msra.mxu0 %v48
    %94 = vmatprep.subr.mxu0 0.0
    %95 = vmatpush2.msra.mxu0 0.0
    %96 = vmatprep.subr.mxu0 0.0
    %97 = vmatpush2.msra.mxu0 0.0
    %98 = vmatprep.subr.mxu0 0.0
    %99 = vmatpush2.msra.mxu0 0.0
    %100 = vmatprep.subr.mxu0 0.0
    %101 = vmatpush2.msra.mxu0 0.0
    %102 = vmatprep.subr.mxu0 0.0
    %103 = vmatpush2.msra.mxu0 0.0
    %104 = vmatprep.subr.mxu0 0.0
    %105 = vmatpush2.msra.mxu0 0.0
    %106 = vmatprep.subr.mxu0 0.0
    %107 = vmatpush2.msra.mxu0 0.0
    %108 = vmatprep.subr.mxu0 0.0
    %109 = vmatpush2.msra.mxu0 0.0
    %110 = vmatprep.subr.mxu0 0.0
    %111 = vmatpush2.msra.mxu0 0.0
    %112 = vmatprep.subr.mxu0 0.0
    %113 = vmatpush2.msra.mxu0 0.0
    %114 = vmatprep.subr.mxu0 0.0
    %115 = vmatpush2.msra.mxu0 0.0
    %116 = vmatprep.subr.mxu0 0.0
    %117 = vmatpush2.msra.mxu0 0.0
    %118 = vmatprep.subr.mxu0 0.0
    %119 = vmatpush2.msra.mxu0 0.0
    %120 = vmatprep.subr.mxu0 0.0
    %121 = vmatpush2.msra.mxu0 0.0
    %122 = vmatprep.subr.mxu0 0.0
    %123 = vmatpush2.msra.mxu0 0.0
    %124 = vmatprep.subr.mxu0 0.0
    %125 = vmatpush2.msra.mxu0 0.0
    %126 = vmatprep.mubr.f32.mxu0 0.0
    %127 = vmatmul.mubr.f32.gmra.mxu0 %v60
    %v128 = vpop.f32.mrf.mxu0
    %v129 = vadd.f32 0.0, %v128
    %v130 = vpop.f32.mrf.mxu0
    %131 = vdwg.mxu0
    %v132 = vmul.f32 %v129, 0.5
    %v133 = vtanh.pop %v132
    %v134 = vmul.f32 %v133, 0.5
    %v135 = vadd.f32 %v134, 0.5
    %v136 = vmul.f32 %v135, %v135
    %v137 = vmul.f32 %v136, 0.26041666
    %v138 = vadd.f32 %v137, 0.0
    %vm139 = vcmask 64512
    %v141 = vsel %vm139, %v135, 0
    %143 = vmatprep.subr.mxu0 0.0
    %144 = vmatpush1.msra.mxu0 0.0
    %145 = vmatprep.subr.mxu0 0.0
    %146 = vmatpush1.msra.mxu0 0.0
    %147 = vmatprep.subr.mxu0 0.0
    %148 = vmatpush1.msra.mxu0 0.0
    %149 = vmatprep.subr.mxu0 0.0
    %150 = vmatpush1.msra.mxu0 0.0
    %151 = vmatprep.subr.mxu0 0.0
    %152 = vmatpush1.msra.mxu0 0.0
    %153 = vmatprep.subr.mxu0 0.0
    %154 = vmatpush1.msra.mxu0 0.0
    %155 = vmatprep.subr.mxu0 0.0
    %156 = vmatpush1.msra.mxu0 0.0
    %157 = vmatprep.subr.mxu0 0.0
    %158 = vmatpush1.msra.mxu0 0.0
    %159 = vmatprep.subr.mxu0 0.0
    %160 = vmatpush1.msra.mxu0 0.0
    %161 = vmatprep.subr.mxu0 0.0
    %162 = vmatpush1.msra.mxu0 0.0
    %163 = vmatprep.subr.mxu0 0.0
    %164 = vmatpush1.msra.mxu0 0.0
    %165 = vmatprep.subr.mxu0 0.0
    %166 = vmatpush1.msra.mxu0 0.0
    %167 = vmatprep.subr.mxu0 0.0
    %168 = vmatpush1.msra.mxu0 0.0
    %169 = vmatprep.subr.mxu0 0.0
    %170 = vmatpush1.msra.mxu0 0.0
    %171 = vmatprep.subr.mxu0 0.0
    %172 = vmatpush1.msra.mxu0 0.0
    %173 = vmatprep.subr.mxu0 0.0
    %174 = vmatpush1.msra.mxu0 %v50
    %175 = vmatprep.subr.mxu0 0.0
    %176 = vmatpush2.msra.mxu0 0.0
    %177 = vmatprep.subr.mxu0 0.0
    %178 = vmatpush2.msra.mxu0 0.0
    %179 = vmatprep.subr.mxu0 0.0
    %180 = vmatpush2.msra.mxu0 0.0
    %181 = vmatprep.subr.mxu0 0.0
    %182 = vmatpush2.msra.mxu0 0.0
    %183 = vmatprep.subr.mxu0 0.0
    %184 = vmatpush2.msra.mxu0 0.0
    %185 = vmatprep.subr.mxu0 0.0
    %186 = vmatpush2.msra.mxu0 0.0
    %187 = vmatprep.subr.mxu0 0.0
    %188 = vmatpush2.msra.mxu0 0.0
    %189 = vmatprep.subr.mxu0 0.0
    %190 = vmatpush2.msra.mxu0 0.0
    %191 = vmatprep.subr.mxu0 0.0
    %192 = vmatpush2.msra.mxu0 0.0
    %193 = vmatprep.subr.mxu0 0.0
    %194 = vmatpush2.msra.mxu0 0.0
    %195 = vmatprep.subr.mxu0 0.0
    %196 = vmatpush2.msra.mxu0 0.0
    %197 = vmatprep.subr.mxu0 0.0
    %198 = vmatpush2.msra.mxu0 0.0
    %199 = vmatprep.subr.mxu0 0.0
    %200 = vmatpush2.msra.mxu0 0.0
    %201 = vmatprep.subr.mxu0 0.0
    %202 = vmatpush2.msra.mxu0 0.0
    %203 = vmatprep.subr.mxu0 0.0
    %204 = vmatpush2.msra.mxu0 0.0
    %205 = vmatprep.subr.mxu0 0.0
    %206 = vmatpush2.msra.mxu0 0.0
    %207 = vmatprep.mubr.f32.mxu0 0.0
    %208 = vmatmul.mubr.f32.gmra.mxu0 %v141
    %v209 = vpop.f32.mrf.mxu0
    %v210 = vadd.f32 0.0, %v209
    %v211 = vpop.f32.mrf.mxu0
    %212 = vdwg.mxu0
    %v213 = vmul.f32 %v210, %v210
    %v214 = vmul.f32 %v213, 5.952381e-06
    %v215 = vadd.f32 %v138, %v214
    %v217 = vsel %vm139, %v51, 0
    %219 = vmatprep.subr.mxu0 0.0
    %220 = vmatpush1.msra.mxu0 0.0
    %221 = vmatprep.subr.mxu0 0.0
    %222 = vmatpush1.msra.mxu0 0.0
    %223 = vmatprep.subr.mxu0 0.0
    %224 = vmatpush1.msra.mxu0 0.0
    %225 = vmatprep.subr.mxu0 0.0
    %226 = vmatpush1.msra.mxu0 0.0
    %227 = vmatprep.subr.mxu0 0.0
    %228 = vmatpush1.msra.mxu0 0.0
    %229 = vmatprep.subr.mxu0 0.0
    %230 = vmatpush1.msra.mxu0 0.0
    %231 = vmatprep.subr.mxu0 0.0
    %232 = vmatpush1.msra.mxu0 0.0
    %233 = vmatprep.subr.mxu0 0.0
    %234 = vmatpush1.msra.mxu0 0.0
    %235 = vmatprep.subr.mxu0 0.0
    %236 = vmatpush1.msra.mxu0 0.0
    %237 = vmatprep.subr.mxu0 0.0
    %238 = vmatpush1.msra.mxu0 0.0
    %239 = vmatprep.subr.mxu0 0.0
    %240 = vmatpush1.msra.mxu0 0.0
    %241 = vmatprep.subr.mxu0 0.0
    %242 = vmatpush1.msra.mxu0 0.0
    %243 = vmatprep.subr.mxu0 0.0
    %244 = vmatpush1.msra.mxu0 0.0
    %245 = vmatprep.subr.mxu0 0.0
    %246 = vmatpush1.msra.mxu0 0.0
    %247 = vmatprep.subr.mxu0 0.0
    %248 = vmatpush1.msra.mxu0 0.0
    %249 = vmatprep.subr.mxu0 0.0
    %250 = vmatpush1.msra.mxu0 %v135
    %251 = vmatprep.subr.mxu0 0.0
    %252 = vmatpush2.msra.mxu0 0.0
    %253 = vmatprep.subr.mxu0 0.0
    %254 = vmatpush2.msra.mxu0 0.0
    %255 = vmatprep.subr.mxu0 0.0
    %256 = vmatpush2.msra.mxu0 0.0
    %257 = vmatprep.subr.mxu0 0.0
    %258 = vmatpush2.msra.mxu0 0.0
    %259 = vmatprep.subr.mxu0 0.0
    %260 = vmatpush2.msra.mxu0 0.0
    %261 = vmatprep.subr.mxu0 0.0
    %262 = vmatpush2.msra.mxu0 0.0
    %263 = vmatprep.subr.mxu0 0.0
    %264 = vmatpush2.msra.mxu0 0.0
    %265 = vmatprep.subr.mxu0 0.0
    %266 = vmatpush2.msra.mxu0 0.0
    %267 = vmatprep.subr.mxu0 0.0
    %268 = vmatpush2.msra.mxu0 0.0
    %269 = vmatprep.subr.mxu0 0.0
    %270 = vmatpush2.msra.mxu0 0.0
    %271 = vmatprep.subr.mxu0 0.0
    %272 = vmatpush2.msra.mxu0 0.0
    %273 = vmatprep.subr.mxu0 0.0
    %274 = vmatpush2.msra.mxu0 0.0
    %275 = vmatprep.subr.mxu0 0.0
    %276 = vmatpush2.msra.mxu0 0.0
    %277 = vmatprep.subr.mxu0 0.0
    %278 = vmatpush2.msra.mxu0 0.0
    %279 = vmatprep.subr.mxu0 0.0
    %280 = vmatpush2.msra.mxu0 0.0
    %281 = vmatprep.subr.mxu0 0.0
    %282 = vmatpush2.msra.mxu0 0.0
    %283 = vmatprep.mubr.f32.mxu0 0.0
    %284 = vmatmul.mubr.f32.gmra.mxu0 %v217
    %v285 = vpop.f32.mrf.mxu0
    %v286 = vadd.f32 0.0, %v285
    %v287 = vpop.f32.mrf.mxu0
    %288 = vdwg.mxu0
    %v289 = vmul.f32 %v286, %v286
    %v290 = vmul.f32 %v289, 5.952381e-06
    %v291 = vadd.f32 %v215, %v290
    %s292 = scalar_lea.vmem [#allocation6], 8
    %v293 = vld [vmem:[%s292] sm:$0xff]
    %295 = vrot.lane.b32.xlu0 %v293, 112
    %v296 = vpop.permute.xlu0 %295
    %v298 = vadd.f32 %v293, %v296
    %v300 = vsel %vm58, %v298, 0
    %302 = vmatprep.subr.mxu0 0.0
    %303 = vmatpush1.msra.mxu0 0.0
    %304 = vmatprep.subr.mxu0 0.0
    %305 = vmatpush1.msra.mxu0 0.0
    %306 = vmatprep.subr.mxu0 0.0
    %307 = vmatpush1.msra.mxu0 0.0
    %308 = vmatprep.subr.mxu0 0.0
    %309 = vmatpush1.msra.mxu0 0.0
    %310 = vmatprep.subr.mxu0 0.0
    %311 = vmatpush1.msra.mxu0 0.0
    %312 = vmatprep.subr.mxu0 0.0
    %313 = vmatpush1.msra.mxu0 0.0
    %314 = vmatprep.subr.mxu0 0.0
    %315 = vmatpush1.msra.mxu0 0.0
    %316 = vmatprep.subr.mxu0 0.0
    %317 = vmatpush1.msra.mxu0 0.0
    %318 = vmatprep.subr.mxu0 0.0
    %319 = vmatpush1.msra.mxu0 0.0
    %320 = vmatprep.subr.mxu0 0.0
    %321 = vmatpush1.msra.mxu0 0.0
    %322 = vmatprep.subr.mxu0 0.0
    %323 = vmatpush1.msra.mxu0 0.0
    %324 = vmatprep.subr.mxu0 0.0
    %325 = vmatpush1.msra.mxu0 0.0
    %326 = vmatprep.subr.mxu0 0.0
    %327 = vmatpush1.msra.mxu0 0.0
    %328 = vmatprep.subr.mxu0 0.0
    %329 = vmatpush1.msra.mxu0 0.0
    %330 = vmatprep.subr.mxu0 0.0
    %331 = vmatpush1.msra.mxu0 %v49
    %332 = vmatprep.subr.mxu0 0.0
    %333 = vmatpush1.msra.mxu0 %v48
    %334 = vmatprep.subr.mxu0 0.0
    %335 = vmatpush2.msra.mxu0 0.0
    %336 = vmatprep.subr.mxu0 0.0
    %337 = vmatpush2.msra.mxu0 0.0
    %338 = vmatprep.subr.mxu0 0.0
    %339 = vmatpush2.msra.mxu0 0.0
    %340 = vmatprep.subr.mxu0 0.0
    %341 = vmatpush2.msra.mxu0 0.0
    %342 = vmatprep.subr.mxu0 0.0
    %343 = vmatpush2.msra.mxu0 0.0
    %344 = vmatprep.subr.mxu0 0.0
    %345 = vmatpush2.msra.mxu0 0.0
    %346 = vmatprep.subr.mxu0 0.0
    %347 = vmatpush2.msra.mxu0 0.0
    %348 = vmatprep.subr.mxu0 0.0
    %349 = vmatpush2.msra.mxu0 0.0
    %350 = vmatprep.subr.mxu0 0.0
    %351 = vmatpush2.msra.mxu0 0.0
    %352 = vmatprep.subr.mxu0 0.0
    %353 = vmatpush2.msra.mxu0 0.0
    %354 = vmatprep.subr.mxu0 0.0
    %355 = vmatpush2.msra.mxu0 0.0
    %356 = vmatprep.subr.mxu0 0.0
    %357 = vmatpush2.msra.mxu0 0.0
    %358 = vmatprep.subr.mxu0 0.0
    %359 = vmatpush2.msra.mxu0 0.0
    %360 = vmatprep.subr.mxu0 0.0
    %361 = vmatpush2.msra.mxu0 0.0
    %362 = vmatprep.subr.mxu0 0.0
    %363 = vmatpush2.msra.mxu0 0.0
    %364 = vmatprep.subr.mxu0 0.0
    %365 = vmatpush2.msra.mxu0 0.0
    %366 = vmatprep.mubr.f32.mxu0 0.0
    %367 = vmatmul.mubr.f32.gmra.mxu0 %v300
    %v368 = vpop.f32.mrf.mxu0
    %v369 = vadd.f32 0.0, %v368
    %v370 = vpop.f32.mrf.mxu0
    %371 = vdwg.mxu0
    %v372 = vmul.f32 %v369, 0.5
    %v373 = vtanh.pop %v372
    %v374 = vmul.f32 %v373, 0.5
    %v375 = vadd.f32 %v374, 0.5
    %v376 = vmul.f32 %v375, %v375
    %v377 = vmul.f32 %v376, 0.26041666
    %v378 = vadd.f32 %v291, %v377
    %v380 = vsel %vm139, %v375, 0
    %382 = vmatprep.subr.mxu0 0.0
    %383 = vmatpush1.msra.mxu0 0.0
    %384 = vmatprep.subr.mxu0 0.0
    %385 = vmatpush1.msra.mxu0 0.0
    %386 = vmatprep.subr.mxu0 0.0
    %387 = vmatpush1.msra.mxu0 0.0
    %388 = vmatprep.subr.mxu0 0.0
    %389 = vmatpush1.msra.mxu0 0.0
    %390 = vmatprep.subr.mxu0 0.0
    %391 = vmatpush1.msra.mxu0 0.0
    %392 = vmatprep.subr.mxu0 0.0
    %393 = vmatpush1.msra.mxu0 0.0
    %394 = vmatprep.subr.mxu0 0.0
    %395 = vmatpush1.msra.mxu0 0.0
    %396 = vmatprep.subr.mxu0 0.0
    %397 = vmatpush1.msra.mxu0 0.0
    %398 = vmatprep.subr.mxu0 0.0
    %399 = vmatpush1.msra.mxu0 0.0
    %400 = vmatprep.subr.mxu0 0.0
    %401 = vmatpush1.msra.mxu0 0.0
    %402 = vmatprep.subr.mxu0 0.0
    %403 = vmatpush1.msra.mxu0 0.0
    %404 = vmatprep.subr.mxu0 0.0
    %405 = vmatpush1.msra.mxu0 0.0
    %406 = vmatprep.subr.mxu0 0.0
    %407 = vmatpush1.msra.mxu0 0.0
    %408 = vmatprep.subr.mxu0 0.0
    %409 = vmatpush1.msra.mxu0 0.0
    %410 = vmatprep.subr.mxu0 0.0
    %411 = vmatpush1.msra.mxu0 0.0
    %412 = vmatprep.subr.mxu0 0.0
    %413 = vmatpush1.msra.mxu0 %v50
    %414 = vmatprep.subr.mxu0 0.0
    %415 = vmatpush2.msra.mxu0 0.0
    %416 = vmatprep.subr.mxu0 0.0
    %417 = vmatpush2.msra.mxu0 0.0
    %418 = vmatprep.subr.mxu0 0.0
    %419 = vmatpush2.msra.mxu0 0.0
    %420 = vmatprep.subr.mxu0 0.0
    %421 = vmatpush2.msra.mxu0 0.0
    %422 = vmatprep.subr.mxu0 0.0
    %423 = vmatpush2.msra.mxu0 0.0
    %424 = vmatprep.subr.mxu0 0.0
    %425 = vmatpush2.msra.mxu0 0.0
    %426 = vmatprep.subr.mxu0 0.0
    %427 = vmatpush2.msra.mxu0 0.0
    %428 = vmatprep.subr.mxu0 0.0
    %429 = vmatpush2.msra.mxu0 0.0
    %430 = vmatprep.subr.mxu0 0.0
    %431 = vmatpush2.msra.mxu0 0.0
    %432 = vmatprep.subr.mxu0 0.0
    %433 = vmatpush2.msra.mxu0 0.0
    %434 = vmatprep.subr.mxu0 0.0
    %435 = vmatpush2.msra.mxu0 0.0
    %436 = vmatprep.subr.mxu0 0.0
    %437 = vmatpush2.msra.mxu0 0.0
    %438 = vmatprep.subr.mxu0 0.0
    %439 = vmatpush2.msra.mxu0 0.0
    %440 = vmatprep.subr.mxu0 0.0
    %441 = vmatpush2.msra.mxu0 0.0
    %442 = vmatprep.subr.mxu0 0.0
    %443 = vmatpush2.msra.mxu0 0.0
    %444 = vmatprep.subr.mxu0 0.0
    %445 = vmatpush2.msra.mxu0 0.0
    %446 = vmatprep.mubr.f32.mxu0 0.0
    %447 = vmatmul.mubr.f32.gmra.mxu0 %v380
    %v448 = vpop.f32.mrf.mxu0
    %v449 = vadd.f32 0.0, %v448
    %v450 = vpop.f32.mrf.mxu0
    %451 = vdwg.mxu0
    %v452 = vmul.f32 %v449, %v449
    %v453 = vmul.f32 %v452, 5.952381e-06
    %v454 = vadd.f32 %v378, %v453
    %455 = vmatprep.subr.mxu0 0.0
    %456 = vmatpush1.msra.mxu0 0.0
    %457 = vmatprep.subr.mxu0 0.0
    %458 = vmatpush1.msra.mxu0 0.0
    %459 = vmatprep.subr.mxu0 0.0
    %460 = vmatpush1.msra.mxu0 0.0
    %461 = vmatprep.subr.mxu0 0.0
    %462 = vmatpush1.msra.mxu0 0.0
    %463 = vmatprep.subr.mxu0 0.0
    %464 = vmatpush1.msra.mxu0 0.0
    %465 = vmatprep.subr.mxu0 0.0
    %466 = vmatpush1.msra.mxu0 0.0
    %467 = vmatprep.subr.mxu0 0.0
    %468 = vmatpush1.msra.mxu0 0.0
    %469 = vmatprep.subr.mxu0 0.0
    %470 = vmatpush1.msra.mxu0 0.0
    %471 = vmatprep.subr.mxu0 0.0
    %472 = vmatpush1.msra.mxu0 0.0
    %473 = vmatprep.subr.mxu0 0.0
    %474 = vmatpush1.msra.mxu0 0.0
    %475 = vmatprep.subr.mxu0 0.0
    %476 = vmatpush1.msra.mxu0 0.0
    %477 = vmatprep.subr.mxu0 0.0
    %478 = vmatpush1.msra.mxu0 0.0
    %479 = vmatprep.subr.mxu0 0.0
    %480 = vmatpush1.msra.mxu0 0.0
    %481 = vmatprep.subr.mxu0 0.0
    %482 = vmatpush1.msra.mxu0 0.0
    %483 = vmatprep.subr.mxu0 0.0
    %484 = vmatpush1.msra.mxu0 0.0
    %485 = vmatprep.subr.mxu0 0.0
    %486 = vmatpush1.msra.mxu0 %v375
    %487 = vmatprep.subr.mxu0 0.0
    %488 = vmatpush2.msra.mxu0 0.0
    %489 = vmatprep.subr.mxu0 0.0
    %490 = vmatpush2.msra.mxu0 0.0
    %491 = vmatprep.subr.mxu0 0.0
    %492 = vmatpush2.msra.mxu0 0.0
    %493 = vmatprep.subr.mxu0 0.0
    %494 = vmatpush2.msra.mxu0 0.0
    %495 = vmatprep.subr.mxu0 0.0
    %496 = vmatpush2.msra.mxu0 0.0
    %497 = vmatprep.subr.mxu0 0.0
    %498 = vmatpush2.msra.mxu0 0.0
    %499 = vmatprep.subr.mxu0 0.0
    %500 = vmatpush2.msra.mxu0 0.0
    %501 = vmatprep.subr.mxu0 0.0
    %502 = vmatpush2.msra.mxu0 0.0
    %503 = vmatprep.subr.mxu0 0.0
    %504 = vmatpush2.msra.mxu0 0.0
    %505 = vmatprep.subr.mxu0 0.0
    %506 = vmatpush2.msra.mxu0 0.0
    %507 = vmatprep.subr.mxu0 0.0
    %508 = vmatpush2.msra.mxu0 0.0
    %509 = vmatprep.subr.mxu0 0.0
    %510 = vmatpush2.msra.mxu0 0.0
    %511 = vmatprep.subr.mxu0 0.0
    %512 = vmatpush2.msra.mxu0 0.0
    %513 = vmatprep.subr.mxu0 0.0
    %514 = vmatpush2.msra.mxu0 0.0
    %515 = vmatprep.subr.mxu0 0.0
    %516 = vmatpush2.msra.mxu0 0.0
    %517 = vmatprep.subr.mxu0 0.0
    %518 = vmatpush2.msra.mxu0 0.0
    %519 = vmatprep.mubr.f32.mxu0 0.0
    %520 = vmatmul.mubr.f32.gmra.mxu0 %v217
    %v521 = vpop.f32.mrf.mxu0
    %v522 = vadd.f32 0.0, %v521
    %v523 = vpop.f32.mrf.mxu0
    %524 = vdwg.mxu0
    %v525 = vmul.f32 %v522, %v522
    %v526 = vmul.f32 %v525, 5.952381e-06
    %v527 = vadd.f32 %v454, %v526
    %s528 = scalar_lea.vmem [#allocation6], 16
    %v529 = vld [vmem:[%s528] sm:$0xff]
    %531 = vrot.lane.b32.xlu0 %v529, 112
    %v532 = vpop.permute.xlu0 %531
    %v534 = vadd.f32 %v529, %v532
    %v536 = vsel %vm58, %v534, 0
    %538 = vmatprep.subr.mxu0 0.0
    %539 = vmatpush1.msra.mxu0 0.0
    %540 = vmatprep.subr.mxu0 0.0
    %541 = vmatpush1.msra.mxu0 0.0
    %542 = vmatprep.subr.mxu0 0.0
    %543 = vmatpush1.msra.mxu0 0.0
    %544 = vmatprep.subr.mxu0 0.0
    %545 = vmatpush1.msra.mxu0 0.0
    %546 = vmatprep.subr.mxu0 0.0
    %547 = vmatpush1.msra.mxu0 0.0
    %548 = vmatprep.subr.mxu0 0.0
    %549 = vmatpush1.msra.mxu0 0.0
    %550 = vmatprep.subr.mxu0 0.0
    %551 = vmatpush1.msra.mxu0 0.0
    %552 = vmatprep.subr.mxu0 0.0
    %553 = vmatpush1.msra.mxu0 0.0
    %554 = vmatprep.subr.mxu0 0.0
    %555 = vmatpush1.msra.mxu0 0.0
    %556 = vmatprep.subr.mxu0 0.0
    %557 = vmatpush1.msra.mxu0 0.0
    %558 = vmatprep.subr.mxu0 0.0
    %559 = vmatpush1.msra.mxu0 0.0
    %560 = vmatprep.subr.mxu0 0.0
    %561 = vmatpush1.msra.mxu0 0.0
    %562 = vmatprep.subr.mxu0 0.0
    %563 = vmatpush1.msra.mxu0 0.0
    %564 = vmatprep.subr.mxu0 0.0
    %565 = vmatpush1.msra.mxu0 0.0
    %566 = vmatprep.subr.mxu0 0.0
    %567 = vmatpush1.msra.mxu0 %v49
    %568 = vmatprep.subr.mxu0 0.0
    %569 = vmatpush1.msra.mxu0 %v48
    %570 = vmatprep.subr.mxu0 0.0
    %571 = vmatpush2.msra.mxu0 0.0
    %572 = vmatprep.subr.mxu0 0.0
    %573 = vmatpush2.msra.mxu0 0.0
    %574 = vmatprep.subr.mxu0 0.0
    %575 = vmatpush2.msra.mxu0 0.0
    %576 = vmatprep.subr.mxu0 0.0
    %577 = vmatpush2.msra.mxu0 0.0
    %578 = vmatprep.subr.mxu0 0.0
    %579 = vmatpush2.msra.mxu0 0.0
    %580 = vmatprep.subr.mxu0 0.0
    %581 = vmatpush2.msra.mxu0 0.0
    %582 = vmatprep.subr.mxu0 0.0
    %583 = vmatpush2.msra.mxu0 0.0
    %584 = vmatprep.subr.mxu0 0.0
    %585 = vmatpush2.msra.mxu0 0.0
    %586 = vmatprep.subr.mxu0 0.0
    %587 = vmatpush2.msra.mxu0 0.0
    %588 = vmatprep.subr.mxu0 0.0
    %589 = vmatpush2.msra.mxu0 0.0
    %590 = vmatprep.subr.mxu0 0.0
    %591 = vmatpush2.msra.mxu0 0.0
    %592 = vmatprep.subr.mxu0 0.0
    %593 = vmatpush2.msra.mxu0 0.0
    %594 = vmatprep.subr.mxu0 0.0
    %595 = vmatpush2.msra.mxu0 0.0
    %596 = vmatprep.subr.mxu0 0.0
    %597 = vmatpush2.msra.mxu0 0.0
    %598 = vmatprep.subr.mxu0 0.0
    %599 = vmatpush2.msra.mxu0 0.0
    %600 = vmatprep.subr.mxu0 0.0
    %601 = vmatpush2.msra.mxu0 0.0
    %602 = vmatprep.mubr.f32.mxu0 0.0
    %603 = vmatmul.mubr.f32.gmra.mxu0 %v536
    %v604 = vpop.f32.mrf.mxu0
    %v605 = vadd.f32 0.0, %v604
    %v606 = vpop.f32.mrf.mxu0
    %607 = vdwg.mxu0
    %v608 = vmul.f32 %v605, 0.5
    %v609 = vtanh.pop %v608
    %v610 = vmul.f32 %v609, 0.5
    %v611 = vadd.f32 %v610, 0.5
    %v612 = vmul.f32 %v611, %v611
    %v613 = vmul.f32 %v612, 0.26041666
    %v614 = vadd.f32 %v527, %v613
    %v616 = vsel %vm139, %v611, 0
    %618 = vmatprep.subr.mxu0 0.0
    %619 = vmatpush1.msra.mxu0 0.0
    %620 = vmatprep.subr.mxu0 0.0
    %621 = vmatpush1.msra.mxu0 0.0
    %622 = vmatprep.subr.mxu0 0.0
    %623 = vmatpush1.msra.mxu0 0.0
    %624 = vmatprep.subr.mxu0 0.0
    %625 = vmatpush1.msra.mxu0 0.0
    %626 = vmatprep.subr.mxu0 0.0
    %627 = vmatpush1.msra.mxu0 0.0
    %628 = vmatprep.subr.mxu0 0.0
    %629 = vmatpush1.msra.mxu0 0.0
    %630 = vmatprep.subr.mxu0 0.0
    %631 = vmatpush1.msra.mxu0 0.0
    %632 = vmatprep.subr.mxu0 0.0
    %633 = vmatpush1.msra.mxu0 0.0
    %634 = vmatprep.subr.mxu0 0.0
    %635 = vmatpush1.msra.mxu0 0.0
    %636 = vmatprep.subr.mxu0 0.0
    %637 = vmatpush1.msra.mxu0 0.0
    %638 = vmatprep.subr.mxu0 0.0
    %639 = vmatpush1.msra.mxu0 0.0
    %640 = vmatprep.subr.mxu0 0.0
    %641 = vmatpush1.msra.mxu0 0.0
    %642 = vmatprep.subr.mxu0 0.0
    %643 = vmatpush1.msra.mxu0 0.0
    %644 = vmatprep.subr.mxu0 0.0
    %645 = vmatpush1.msra.mxu0 0.0
    %646 = vmatprep.subr.mxu0 0.0
    %647 = vmatpush1.msra.mxu0 0.0
    %648 = vmatprep.subr.mxu0 0.0
    %649 = vmatpush1.msra.mxu0 %v50
    %650 = vmatprep.subr.mxu0 0.0
    %651 = vmatpush2.msra.mxu0 0.0
    %652 = vmatprep.subr.mxu0 0.0
    %653 = vmatpush2.msra.mxu0 0.0
    %654 = vmatprep.subr.mxu0 0.0
    %655 = vmatpush2.msra.mxu0 0.0
    %656 = vmatprep.subr.mxu0 0.0
    %657 = vmatpush2.msra.mxu0 0.0
    %658 = vmatprep.subr.mxu0 0.0
    %659 = vmatpush2.msra.mxu0 0.0
    %660 = vmatprep.subr.mxu0 0.0
    %661 = vmatpush2.msra.mxu0 0.0
    %662 = vmatprep.subr.mxu0 0.0
    %663 = vmatpush2.msra.mxu0 0.0
    %664 = vmatprep.subr.mxu0 0.0
    %665 = vmatpush2.msra.mxu0 0.0
    %666 = vmatprep.subr.mxu0 0.0
    %667 = vmatpush2.msra.mxu0 0.0
    %668 = vmatprep.subr.mxu0 0.0
    %669 = vmatpush2.msra.mxu0 0.0
    %670 = vmatprep.subr.mxu0 0.0
    %671 = vmatpush2.msra.mxu0 0.0
    %672 = vmatprep.subr.mxu0 0.0
    %673 = vmatpush2.msra.mxu0 0.0
    %674 = vmatprep.subr.mxu0 0.0
    %675 = vmatpush2.msra.mxu0 0.0
    %676 = vmatprep.subr.mxu0 0.0
    %677 = vmatpush2.msra.mxu0 0.0
    %678 = vmatprep.subr.mxu0 0.0
    %679 = vmatpush2.msra.mxu0 0.0
    %680 = vmatprep.subr.mxu0 0.0
    %681 = vmatpush2.msra.mxu0 0.0
    %682 = vmatprep.mubr.f32.mxu0 0.0
    %683 = vmatmul.mubr.f32.gmra.mxu0 %v616
    %v684 = vpop.f32.mrf.mxu0
    %v685 = vadd.f32 0.0, %v684
    %v686 = vpop.f32.mrf.mxu0
    %687 = vdwg.mxu0
    %v688 = vmul.f32 %v685, %v685
    %v689 = vmul.f32 %v688, 5.952381e-06
    %v690 = vadd.f32 %v614, %v689
    %691 = vmatprep.subr.mxu0 0.0
    %692 = vmatpush1.msra.mxu0 0.0
    %693 = vmatprep.subr.mxu0 0.0
    %694 = vmatpush1.msra.mxu0 0.0
    %695 = vmatprep.subr.mxu0 0.0
    %696 = vmatpush1.msra.mxu0 0.0
    %697 = vmatprep.subr.mxu0 0.0
    %698 = vmatpush1.msra.mxu0 0.0
    %699 = vmatprep.subr.mxu0 0.0
    %700 = vmatpush1.msra.mxu0 0.0
    %701 = vmatprep.subr.mxu0 0.0
    %702 = vmatpush1.msra.mxu0 0.0
    %703 = vmatprep.subr.mxu0 0.0
    %704 = vmatpush1.msra.mxu0 0.0
    %705 = vmatprep.subr.mxu0 0.0
    %706 = vmatpush1.msra.mxu0 0.0
    %707 = vmatprep.subr.mxu0 0.0
    %708 = vmatpush1.msra.mxu0 0.0
    %709 = vmatprep.subr.mxu0 0.0
    %710 = vmatpush1.msra.mxu0 0.0
    %711 = vmatprep.subr.mxu0 0.0
    %712 = vmatpush1.msra.mxu0 0.0
    %713 = vmatprep.subr.mxu0 0.0
    %714 = vmatpush1.msra.mxu0 0.0
    %715 = vmatprep.subr.mxu0 0.0
    %716 = vmatpush1.msra.mxu0 0.0
    %717 = vmatprep.subr.mxu0 0.0
    %718 = vmatpush1.msra.mxu0 0.0
    %719 = vmatprep.subr.mxu0 0.0
    %720 = vmatpush1.msra.mxu0 0.0
    %721 = vmatprep.subr.mxu0 0.0
    %722 = vmatpush1.msra.mxu0 %v611
    %723 = vmatprep.subr.mxu0 0.0
    %724 = vmatpush2.msra.mxu0 0.0
    %725 = vmatprep.subr.mxu0 0.0
    %726 = vmatpush2.msra.mxu0 0.0
    %727 = vmatprep.subr.mxu0 0.0
    %728 = vmatpush2.msra.mxu0 0.0
    %729 = vmatprep.subr.mxu0 0.0
    %730 = vmatpush2.msra.mxu0 0.0
    %731 = vmatprep.subr.mxu0 0.0
    %732 = vmatpush2.msra.mxu0 0.0
    %733 = vmatprep.subr.mxu0 0.0
    %734 = vmatpush2.msra.mxu0 0.0
    %735 = vmatprep.subr.mxu0 0.0
    %736 = vmatpush2.msra.mxu0 0.0
    %737 = vmatprep.subr.mxu0 0.0
    %738 = vmatpush2.msra.mxu0 0.0
    %739 = vmatprep.subr.mxu0 0.0
    %740 = vmatpush2.msra.mxu0 0.0
    %741 = vmatprep.subr.mxu0 0.0
    %742 = vmatpush2.msra.mxu0 0.0
    %743 = vmatprep.subr.mxu0 0.0
    %744 = vmatpush2.msra.mxu0 0.0
    %745 = vmatprep.subr.mxu0 0.0
    %746 = vmatpush2.msra.mxu0 0.0
    %747 = vmatprep.subr.mxu0 0.0
    %748 = vmatpush2.msra.mxu0 0.0
    %749 = vmatprep.subr.mxu0 0.0
    %750 = vmatpush2.msra.mxu0 0.0
    %751 = vmatprep.subr.mxu0 0.0
    %752 = vmatpush2.msra.mxu0 0.0
    %753 = vmatprep.subr.mxu0 0.0
    %754 = vmatpush2.msra.mxu0 0.0
    %755 = vmatprep.mubr.f32.mxu0 0.0
    %756 = vmatmul.mubr.f32.gmra.mxu0 %v217
    %v757 = vpop.f32.mrf.mxu0
    %v758 = vadd.f32 0.0, %v757
    %v759 = vpop.f32.mrf.mxu0
    %760 = vdwg.mxu0
    %v761 = vmul.f32 %v758, %v758
    %v762 = vmul.f32 %v761, 5.952381e-06
    %v763 = vadd.f32 %v690, %v762
    %s764 = sld [smem:[#allocation2 + $0x3]]
    %s765 = sld [smem:[#allocation2]]
    %v766 = vstv %s765
    %v767 = vmul.f32 %v766, %v135
    %v768 = vstv %s764
    %v769 = vadd.f32 %v768, %v767
    %s770 = sld [smem:[#allocation2 + $0x1]]
    %v771 = vstv %s770
    %v772 = vmul.f32 %v771, %v375
    %v773 = vadd.f32 %v769, %v772
    %s774 = sld [smem:[#allocation2 + $0x2]]
    %v775 = vstv %s774
    %v776 = vmul.f32 %v775, %v611
    %v777 = vadd.f32 %v773, %v776
    %v778 = vmax.f32 %v777, 0.0
    %v779 = vmul.f32 %v778, -0.0078125
    %v780 = vadd.f32 %v763, %v779
    %s781 = sld [smem:[#allocation2 + $0x7]]
    %s782 = sld [smem:[#allocation2 + $0x4]]
    %v783 = vstv %s782
    %v784 = vmul.f32 %v783, %v135
    %v785 = vstv %s781
    %v786 = vadd.f32 %v785, %v784
    %s787 = sld [smem:[#allocation2 + $0x5]]
    %v788 = vstv %s787
    %v789 = vmul.f32 %v788, %v375
    %v790 = vadd.f32 %v786, %v789
    %s791 = sld [smem:[#allocation2 + $0x6]]
    %v792 = vstv %s791
    %v793 = vmul.f32 %v792, %v611
    %v794 = vadd.f32 %v790, %v793
    %v795 = vmax.f32 %v794, 0.0
    %v796 = vmul.f32 %v795, -0.0078125
    %v797 = vadd.f32 %v780, %v796
    %s798 = scalar_lea.vmem [#allocation6], 24
    %v799 = vld [vmem:[%s798] sm:$0xff]
    %801 = vrot.lane.b32.xlu0 %v799, 112
    %v802 = vpop.permute.xlu0 %801
    %v804 = vadd.f32 %v799, %v802
    %v806 = vsel %vm58, %v804, 0
    %808 = vmatprep.subr.mxu0 0.0
    %809 = vmatpush1.msra.mxu0 0.0
    %810 = vmatprep.subr.mxu0 0.0
    %811 = vmatpush1.msra.mxu0 0.0
    %812 = vmatprep.subr.mxu0 0.0
    %813 = vmatpush1.msra.mxu0 0.0
    %814 = vmatprep.subr.mxu0 0.0
    %815 = vmatpush1.msra.mxu0 0.0
    %816 = vmatprep.subr.mxu0 0.0
    %817 = vmatpush1.msra.mxu0 0.0
    %818 = vmatprep.subr.mxu0 0.0
    %819 = vmatpush1.msra.mxu0 0.0
    %820 = vmatprep.subr.mxu0 0.0
    %821 = vmatpush1.msra.mxu0 0.0
    %822 = vmatprep.subr.mxu0 0.0
    %823 = vmatpush1.msra.mxu0 0.0
    %824 = vmatprep.subr.mxu0 0.0
    %825 = vmatpush1.msra.mxu0 0.0
    %826 = vmatprep.subr.mxu0 0.0
    %827 = vmatpush1.msra.mxu0 0.0
    %828 = vmatprep.subr.mxu0 0.0
    %829 = vmatpush1.msra.mxu0 0.0
    %830 = vmatprep.subr.mxu0 0.0
    %831 = vmatpush1.msra.mxu0 0.0
    %832 = vmatprep.subr.mxu0 0.0
    %833 = vmatpush1.msra.mxu0 0.0
    %834 = vmatprep.subr.mxu0 0.0
    %835 = vmatpush1.msra.mxu0 0.0
    %836 = vmatprep.subr.mxu0 0.0
    %837 = vmatpush1.msra.mxu0 %v49
    %838 = vmatprep.subr.mxu0 0.0
    %839 = vmatpush1.msra.mxu0 %v48
    %840 = vmatprep.subr.mxu0 0.0
    %841 = vmatpush2.msra.mxu0 0.0
    %842 = vmatprep.subr.mxu0 0.0
    %843 = vmatpush2.msra.mxu0 0.0
    %844 = vmatprep.subr.mxu0 0.0
    %845 = vmatpush2.msra.mxu0 0.0
    %846 = vmatprep.subr.mxu0 0.0
    %847 = vmatpush2.msra.mxu0 0.0
    %848 = vmatprep.subr.mxu0 0.0
    %849 = vmatpush2.msra.mxu0 0.0
    %850 = vmatprep.subr.mxu0 0.0
    %851 = vmatpush2.msra.mxu0 0.0
    %852 = vmatprep.subr.mxu0 0.0
    %853 = vmatpush2.msra.mxu0 0.0
    %854 = vmatprep.subr.mxu0 0.0
    %855 = vmatpush2.msra.mxu0 0.0
    %856 = vmatprep.subr.mxu0 0.0
    %857 = vmatpush2.msra.mxu0 0.0
    %858 = vmatprep.subr.mxu0 0.0
    %859 = vmatpush2.msra.mxu0 0.0
    %860 = vmatprep.subr.mxu0 0.0
    %861 = vmatpush2.msra.mxu0 0.0
    %862 = vmatprep.subr.mxu0 0.0
    %863 = vmatpush2.msra.mxu0 0.0
    %864 = vmatprep.subr.mxu0 0.0
    %865 = vmatpush2.msra.mxu0 0.0
    %866 = vmatprep.subr.mxu0 0.0
    %867 = vmatpush2.msra.mxu0 0.0
    %868 = vmatprep.subr.mxu0 0.0
    %869 = vmatpush2.msra.mxu0 0.0
    %870 = vmatprep.subr.mxu0 0.0
    %871 = vmatpush2.msra.mxu0 0.0
    %872 = vmatprep.mubr.f32.mxu0 0.0
    %873 = vmatmul.mubr.f32.gmra.mxu0 %v806
    %v874 = vpop.f32.mrf.mxu0
    %v875 = vadd.f32 0.0, %v874
    %v876 = vpop.f32.mrf.mxu0
    %877 = vdwg.mxu0
    %v878 = vmul.f32 %v875, 0.5
    %v879 = vtanh.pop %v878
    %v880 = vmul.f32 %v879, 0.5
    %v881 = vadd.f32 %v880, 0.5
    %v882 = vmul.f32 %v881, %v881
    %v883 = vmul.f32 %v882, 0.26041666
    %v884 = vadd.f32 %v797, %v883
    %v886 = vsel %vm139, %v881, 0
    %888 = vmatprep.subr.mxu0 0.0
    %889 = vmatpush1.msra.mxu0 0.0
    %890 = vmatprep.subr.mxu0 0.0
    %891 = vmatpush1.msra.mxu0 0.0
    %892 = vmatprep.subr.mxu0 0.0
    %893 = vmatpush1.msra.mxu0 0.0
    %894 = vmatprep.subr.mxu0 0.0
    %895 = vmatpush1.msra.mxu0 0.0
    %896 = vmatprep.subr.mxu0 0.0
    %897 = vmatpush1.msra.mxu0 0.0
    %898 = vmatprep.subr.mxu0 0.0
    %899 = vmatpush1.msra.mxu0 0.0
    %900 = vmatprep.subr.mxu0 0.0
    %901 = vmatpush1.msra.mxu0 0.0
    %902 = vmatprep.subr.mxu0 0.0
    %903 = vmatpush1.msra.mxu0 0.0
    %904 = vmatprep.subr.mxu0 0.0
    %905 = vmatpush1.msra.mxu0 0.0
    %906 = vmatprep.subr.mxu0 0.0
    %907 = vmatpush1.msra.mxu0 0.0
    %908 = vmatprep.subr.mxu0 0.0
    %909 = vmatpush1.msra.mxu0 0.0
    %910 = vmatprep.subr.mxu0 0.0
    %911 = vmatpush1.msra.mxu0 0.0
    %912 = vmatprep.subr.mxu0 0.0
    %913 = vmatpush1.msra.mxu0 0.0
    %914 = vmatprep.subr.mxu0 0.0
    %915 = vmatpush1.msra.mxu0 0.0
    %916 = vmatprep.subr.mxu0 0.0
    %917 = vmatpush1.msra.mxu0 0.0
    %918 = vmatprep.subr.mxu0 0.0
    %919 = vmatpush1.msra.mxu0 %v50
    %920 = vmatprep.subr.mxu0 0.0
    %921 = vmatpush2.msra.mxu0 0.0
    %922 = vmatprep.subr.mxu0 0.0
    %923 = vmatpush2.msra.mxu0 0.0
    %924 = vmatprep.subr.mxu0 0.0
    %925 = vmatpush2.msra.mxu0 0.0
    %926 = vmatprep.subr.mxu0 0.0
    %927 = vmatpush2.msra.mxu0 0.0
    %928 = vmatprep.subr.mxu0 0.0
    %929 = vmatpush2.msra.mxu0 0.0
    %930 = vmatprep.subr.mxu0 0.0
    %931 = vmatpush2.msra.mxu0 0.0
    %932 = vmatprep.subr.mxu0 0.0
    %933 = vmatpush2.msra.mxu0 0.0
    %934 = vmatprep.subr.mxu0 0.0
    %935 = vmatpush2.msra.mxu0 0.0
    %936 = vmatprep.subr.mxu0 0.0
    %937 = vmatpush2.msra.mxu0 0.0
    %938 = vmatprep.subr.mxu0 0.0
    %939 = vmatpush2.msra.mxu0 0.0
    %940 = vmatprep.subr.mxu0 0.0
    %941 = vmatpush2.msra.mxu0 0.0
    %942 = vmatprep.subr.mxu0 0.0
    %943 = vmatpush2.msra.mxu0 0.0
    %944 = vmatprep.subr.mxu0 0.0
    %945 = vmatpush2.msra.mxu0 0.0
    %946 = vmatprep.subr.mxu0 0.0
    %947 = vmatpush2.msra.mxu0 0.0
    %948 = vmatprep.subr.mxu0 0.0
    %949 = vmatpush2.msra.mxu0 0.0
    %950 = vmatprep.subr.mxu0 0.0
    %951 = vmatpush2.msra.mxu0 0.0
    %952 = vmatprep.mubr.f32.mxu0 0.0
    %953 = vmatmul.mubr.f32.gmra.mxu0 %v886
    %v954 = vpop.f32.mrf.mxu0
    %v955 = vadd.f32 0.0, %v954
    %v956 = vpop.f32.mrf.mxu0
    %957 = vdwg.mxu0
    %v958 = vmul.f32 %v955, %v955
    %v959 = vmul.f32 %v958, 5.952381e-06
    %v960 = vadd.f32 %v884, %v959
    %961 = vmatprep.subr.mxu0 0.0
    %962 = vmatpush1.msra.mxu0 0.0
    %963 = vmatprep.subr.mxu0 0.0
    %964 = vmatpush1.msra.mxu0 0.0
    %965 = vmatprep.subr.mxu0 0.0
    %966 = vmatpush1.msra.mxu0 0.0
    %967 = vmatprep.subr.mxu0 0.0
    %968 = vmatpush1.msra.mxu0 0.0
    %969 = vmatprep.subr.mxu0 0.0
    %970 = vmatpush1.msra.mxu0 0.0
    %971 = vmatprep.subr.mxu0 0.0
    %972 = vmatpush1.msra.mxu0 0.0
    %973 = vmatprep.subr.mxu0 0.0
    %974 = vmatpush1.msra.mxu0 0.0
    %975 = vmatprep.subr.mxu0 0.0
    %976 = vmatpush1.msra.mxu0 0.0
    %977 = vmatprep.subr.mxu0 0.0
    %978 = vmatpush1.msra.mxu0 0.0
    %979 = vmatprep.subr.mxu0 0.0
    %980 = vmatpush1.msra.mxu0 0.0
    %981 = vmatprep.subr.mxu0 0.0
    %982 = vmatpush1.msra.mxu0 0.0
    %983 = vmatprep.subr.mxu0 0.0
    %984 = vmatpush1.msra.mxu0 0.0
    %985 = vmatprep.subr.mxu0 0.0
    %986 = vmatpush1.msra.mxu0 0.0
    %987 = vmatprep.subr.mxu0 0.0
    %988 = vmatpush1.msra.mxu0 0.0
    %989 = vmatprep.subr.mxu0 0.0
    %990 = vmatpush1.msra.mxu0 0.0
    %991 = vmatprep.subr.mxu0 0.0
    %992 = vmatpush1.msra.mxu0 %v881
    %993 = vmatprep.subr.mxu0 0.0
    %994 = vmatpush2.msra.mxu0 0.0
    %995 = vmatprep.subr.mxu0 0.0
    %996 = vmatpush2.msra.mxu0 0.0
    %997 = vmatprep.subr.mxu0 0.0
    %998 = vmatpush2.msra.mxu0 0.0
    %999 = vmatprep.subr.mxu0 0.0
    %1000 = vmatpush2.msra.mxu0 0.0
    %1001 = vmatprep.subr.mxu0 0.0
    %1002 = vmatpush2.msra.mxu0 0.0
    %1003 = vmatprep.subr.mxu0 0.0
    %1004 = vmatpush2.msra.mxu0 0.0
    %1005 = vmatprep.subr.mxu0 0.0
    %1006 = vmatpush2.msra.mxu0 0.0
    %1007 = vmatprep.subr.mxu0 0.0
    %1008 = vmatpush2.msra.mxu0 0.0
    %1009 = vmatprep.subr.mxu0 0.0
    %1010 = vmatpush2.msra.mxu0 0.0
    %1011 = vmatprep.subr.mxu0 0.0
    %1012 = vmatpush2.msra.mxu0 0.0
    %1013 = vmatprep.subr.mxu0 0.0
    %1014 = vmatpush2.msra.mxu0 0.0
    %1015 = vmatprep.subr.mxu0 0.0
    %1016 = vmatpush2.msra.mxu0 0.0
    %1017 = vmatprep.subr.mxu0 0.0
    %1018 = vmatpush2.msra.mxu0 0.0
    %1019 = vmatprep.subr.mxu0 0.0
    %1020 = vmatpush2.msra.mxu0 0.0
    %1021 = vmatprep.subr.mxu0 0.0
    %1022 = vmatpush2.msra.mxu0 0.0
    %1023 = vmatprep.subr.mxu0 0.0
    %1024 = vmatpush2.msra.mxu0 0.0
    %1025 = vmatprep.mubr.f32.mxu0 0.0
    %1026 = vmatmul.mubr.f32.gmra.mxu0 %v217
    %v1027 = vpop.f32.mrf.mxu0
    %v1028 = vadd.f32 0.0, %v1027
    %v1029 = vpop.f32.mrf.mxu0
    %1030 = vdwg.mxu0
    %v1031 = vmul.f32 %v1028, %v1028
    %v1032 = vmul.f32 %v1031, 5.952381e-06
    %v1033 = vadd.f32 %v960, %v1032
    %s1034 = scalar_lea.vmem [#allocation6], 32
    %v1035 = vld [vmem:[%s1034] sm:$0xff]
    %1037 = vrot.lane.b32.xlu0 %v1035, 112
    %v1038 = vpop.permute.xlu0 %1037
    %v1040 = vadd.f32 %v1035, %v1038
    %v1042 = vsel %vm58, %v1040, 0
    %1044 = vmatprep.subr.mxu0 0.0
    %1045 = vmatpush1.msra.mxu0 0.0
    %1046 = vmatprep.subr.mxu0 0.0
    %1047 = vmatpush1.msra.mxu0 0.0
    %1048 = vmatprep.subr.mxu0 0.0
    %1049 = vmatpush1.msra.mxu0 0.0
    %1050 = vmatprep.subr.mxu0 0.0
    %1051 = vmatpush1.msra.mxu0 0.0
    %1052 = vmatprep.subr.mxu0 0.0
    %1053 = vmatpush1.msra.mxu0 0.0
    %1054 = vmatprep.subr.mxu0 0.0
    %1055 = vmatpush1.msra.mxu0 0.0
    %1056 = vmatprep.subr.mxu0 0.0
    %1057 = vmatpush1.msra.mxu0 0.0
    %1058 = vmatprep.subr.mxu0 0.0
    %1059 = vmatpush1.msra.mxu0 0.0
    %1060 = vmatprep.subr.mxu0 0.0
    %1061 = vmatpush1.msra.mxu0 0.0
    %1062 = vmatprep.subr.mxu0 0.0
    %1063 = vmatpush1.msra.mxu0 0.0
    %1064 = vmatprep.subr.mxu0 0.0
    %1065 = vmatpush1.msra.mxu0 0.0
    %1066 = vmatprep.subr.mxu0 0.0
    %1067 = vmatpush1.msra.mxu0 0.0
    %1068 = vmatprep.subr.mxu0 0.0
    %1069 = vmatpush1.msra.mxu0 0.0
    %1070 = vmatprep.subr.mxu0 0.0
    %1071 = vmatpush1.msra.mxu0 0.0
    %1072 = vmatprep.subr.mxu0 0.0
    %1073 = vmatpush1.msra.mxu0 %v49
    %1074 = vmatprep.subr.mxu0 0.0
    %1075 = vmatpush1.msra.mxu0 %v48
    %1076 = vmatprep.subr.mxu0 0.0
    %1077 = vmatpush2.msra.mxu0 0.0
    %1078 = vmatprep.subr.mxu0 0.0
    %1079 = vmatpush2.msra.mxu0 0.0
    %1080 = vmatprep.subr.mxu0 0.0
    %1081 = vmatpush2.msra.mxu0 0.0
    %1082 = vmatprep.subr.mxu0 0.0
    %1083 = vmatpush2.msra.mxu0 0.0
    %1084 = vmatprep.subr.mxu0 0.0
    %1085 = vmatpush2.msra.mxu0 0.0
    %1086 = vmatprep.subr.mxu0 0.0
    %1087 = vmatpush2.msra.mxu0 0.0
    %1088 = vmatprep.subr.mxu0 0.0
    %1089 = vmatpush2.msra.mxu0 0.0
    %1090 = vmatprep.subr.mxu0 0.0
    %1091 = vmatpush2.msra.mxu0 0.0
    %1092 = vmatprep.subr.mxu0 0.0
    %1093 = vmatpush2.msra.mxu0 0.0
    %1094 = vmatprep.subr.mxu0 0.0
    %1095 = vmatpush2.msra.mxu0 0.0
    %1096 = vmatprep.subr.mxu0 0.0
    %1097 = vmatpush2.msra.mxu0 0.0
    %1098 = vmatprep.subr.mxu0 0.0
    %1099 = vmatpush2.msra.mxu0 0.0
    %1100 = vmatprep.subr.mxu0 0.0
    %1101 = vmatpush2.msra.mxu0 0.0
    %1102 = vmatprep.subr.mxu0 0.0
    %1103 = vmatpush2.msra.mxu0 0.0
    %1104 = vmatprep.subr.mxu0 0.0
    %1105 = vmatpush2.msra.mxu0 0.0
    %1106 = vmatprep.subr.mxu0 0.0
    %1107 = vmatpush2.msra.mxu0 0.0
    %1108 = vmatprep.mubr.f32.mxu0 0.0
    %1109 = vmatmul.mubr.f32.gmra.mxu0 %v1042
    %v1110 = vpop.f32.mrf.mxu0
    %v1111 = vadd.f32 0.0, %v1110
    %v1112 = vpop.f32.mrf.mxu0
    %1113 = vdwg.mxu0
    %v1114 = vmul.f32 %v1111, 0.5
    %v1115 = vtanh.pop %v1114
    %v1116 = vmul.f32 %v1115, 0.5
    %v1117 = vadd.f32 %v1116, 0.5
    %v1118 = vmul.f32 %v1117, %v1117
    %v1119 = vmul.f32 %v1118, 0.26041666
    %v1120 = vadd.f32 %v1033, %v1119
    %v1122 = vsel %vm139, %v1117, 0
    %1124 = vmatprep.subr.mxu0 0.0
    %1125 = vmatpush1.msra.mxu0 0.0
    %1126 = vmatprep.subr.mxu0 0.0
    %1127 = vmatpush1.msra.mxu0 0.0
    %1128 = vmatprep.subr.mxu0 0.0
    %1129 = vmatpush1.msra.mxu0 0.0
    %1130 = vmatprep.subr.mxu0 0.0
    %1131 = vmatpush1.msra.mxu0 0.0
    %1132 = vmatprep.subr.mxu0 0.0
    %1133 = vmatpush1.msra.mxu0 0.0
    %1134 = vmatprep.subr.mxu0 0.0
    %1135 = vmatpush1.msra.mxu0 0.0
    %1136 = vmatprep.subr.mxu0 0.0
    %1137 = vmatpush1.msra.mxu0 0.0
    %1138 = vmatprep.subr.mxu0 0.0
    %1139 = vmatpush1.msra.mxu0 0.0
    %1140 = vmatprep.subr.mxu0 0.0
    %1141 = vmatpush1.msra.mxu0 0.0
    %1142 = vmatprep.subr.mxu0 0.0
    %1143 = vmatpush1.msra.mxu0 0.0
    %1144 = vmatprep.subr.mxu0 0.0
    %1145 = vmatpush1.msra.mxu0 0.0
    %1146 = vmatprep.subr.mxu0 0.0
    %1147 = vmatpush1.msra.mxu0 0.0
    %1148 = vmatprep.subr.mxu0 0.0
    %1149 = vmatpush1.msra.mxu0 0.0
    %1150 = vmatprep.subr.mxu0 0.0
    %1151 = vmatpush1.msra.mxu0 0.0
    %1152 = vmatprep.subr.mxu0 0.0
    %1153 = vmatpush1.msra.mxu0 0.0
    %1154 = vmatprep.subr.mxu0 0.0
    %1155 = vmatpush1.msra.mxu0 %v50
    %1156 = vmatprep.subr.mxu0 0.0
    %1157 = vmatpush2.msra.mxu0 0.0
    %1158 = vmatprep.subr.mxu0 0.0
    %1159 = vmatpush2.msra.mxu0 0.0
    %1160 = vmatprep.subr.mxu0 0.0
    %1161 = vmatpush2.msra.mxu0 0.0
    %1162 = vmatprep.subr.mxu0 0.0
    %1163 = vmatpush2.msra.mxu0 0.0
    %1164 = vmatprep.subr.mxu0 0.0
    %1165 = vmatpush2.msra.mxu0 0.0
    %1166 = vmatprep.subr.mxu0 0.0
    %1167 = vmatpush2.msra.mxu0 0.0
    %1168 = vmatprep.subr.mxu0 0.0
    %1169 = vmatpush2.msra.mxu0 0.0
    %1170 = vmatprep.subr.mxu0 0.0
    %1171 = vmatpush2.msra.mxu0 0.0
    %1172 = vmatprep.subr.mxu0 0.0
    %1173 = vmatpush2.msra.mxu0 0.0
    %1174 = vmatprep.subr.mxu0 0.0
    %1175 = vmatpush2.msra.mxu0 0.0
    %1176 = vmatprep.subr.mxu0 0.0
    %1177 = vmatpush2.msra.mxu0 0.0
    %1178 = vmatprep.subr.mxu0 0.0
    %1179 = vmatpush2.msra.mxu0 0.0
    %1180 = vmatprep.subr.mxu0 0.0
    %1181 = vmatpush2.msra.mxu0 0.0
    %1182 = vmatprep.subr.mxu0 0.0
    %1183 = vmatpush2.msra.mxu0 0.0
    %1184 = vmatprep.subr.mxu0 0.0
    %1185 = vmatpush2.msra.mxu0 0.0
    %1186 = vmatprep.subr.mxu0 0.0
    %1187 = vmatpush2.msra.mxu0 0.0
    %1188 = vmatprep.mubr.f32.mxu0 0.0
    %1189 = vmatmul.mubr.f32.gmra.mxu0 %v1122
    %v1190 = vpop.f32.mrf.mxu0
    %v1191 = vadd.f32 0.0, %v1190
    %v1192 = vpop.f32.mrf.mxu0
    %1193 = vdwg.mxu0
    %v1194 = vmul.f32 %v1191, %v1191
    %v1195 = vmul.f32 %v1194, 5.952381e-06
    %v1196 = vadd.f32 %v1120, %v1195
    %1197 = vmatprep.subr.mxu0 0.0
    %1198 = vmatpush1.msra.mxu0 0.0
    %1199 = vmatprep.subr.mxu0 0.0
    %1200 = vmatpush1.msra.mxu0 0.0
    %1201 = vmatprep.subr.mxu0 0.0
    %1202 = vmatpush1.msra.mxu0 0.0
    %1203 = vmatprep.subr.mxu0 0.0
    %1204 = vmatpush1.msra.mxu0 0.0
    %1205 = vmatprep.subr.mxu0 0.0
    %1206 = vmatpush1.msra.mxu0 0.0
    %1207 = vmatprep.subr.mxu0 0.0
    %1208 = vmatpush1.msra.mxu0 0.0
    %1209 = vmatprep.subr.mxu0 0.0
    %1210 = vmatpush1.msra.mxu0 0.0
    %1211 = vmatprep.subr.mxu0 0.0
    %1212 = vmatpush1.msra.mxu0 0.0
    %1213 = vmatprep.subr.mxu0 0.0
    %1214 = vmatpush1.msra.mxu0 0.0
    %1215 = vmatprep.subr.mxu0 0.0
    %1216 = vmatpush1.msra.mxu0 0.0
    %1217 = vmatprep.subr.mxu0 0.0
    %1218 = vmatpush1.msra.mxu0 0.0
    %1219 = vmatprep.subr.mxu0 0.0
    %1220 = vmatpush1.msra.mxu0 0.0
    %1221 = vmatprep.subr.mxu0 0.0
    %1222 = vmatpush1.msra.mxu0 0.0
    %1223 = vmatprep.subr.mxu0 0.0
    %1224 = vmatpush1.msra.mxu0 0.0
    %1225 = vmatprep.subr.mxu0 0.0
    %1226 = vmatpush1.msra.mxu0 0.0
    %1227 = vmatprep.subr.mxu0 0.0
    %1228 = vmatpush1.msra.mxu0 %v1117
    %1229 = vmatprep.subr.mxu0 0.0
    %1230 = vmatpush2.msra.mxu0 0.0
    %1231 = vmatprep.subr.mxu0 0.0
    %1232 = vmatpush2.msra.mxu0 0.0
    %1233 = vmatprep.subr.mxu0 0.0
    %1234 = vmatpush2.msra.mxu0 0.0
    %1235 = vmatprep.subr.mxu0 0.0
    %1236 = vmatpush2.msra.mxu0 0.0
    %1237 = vmatprep.subr.mxu0 0.0
    %1238 = vmatpush2.msra.mxu0 0.0
    %1239 = vmatprep.subr.mxu0 0.0
    %1240 = vmatpush2.msra.mxu0 0.0
    %1241 = vmatprep.subr.mxu0 0.0
    %1242 = vmatpush2.msra.mxu0 0.0
    %1243 = vmatprep.subr.mxu0 0.0
    %1244 = vmatpush2.msra.mxu0 0.0
    %1245 = vmatprep.subr.mxu0 0.0
    %1246 = vmatpush2.msra.mxu0 0.0
    %1247 = vmatprep.subr.mxu0 0.0
    %1248 = vmatpush2.msra.mxu0 0.0
    %1249 = vmatprep.subr.mxu0 0.0
    %1250 = vmatpush2.msra.mxu0 0.0
    %1251 = vmatprep.subr.mxu0 0.0
    %1252 = vmatpush2.msra.mxu0 0.0
    %1253 = vmatprep.subr.mxu0 0.0
    %1254 = vmatpush2.msra.mxu0 0.0
    %1255 = vmatprep.subr.mxu0 0.0
    %1256 = vmatpush2.msra.mxu0 0.0
    %1257 = vmatprep.subr.mxu0 0.0
    %1258 = vmatpush2.msra.mxu0 0.0
    %1259 = vmatprep.subr.mxu0 0.0
    %1260 = vmatpush2.msra.mxu0 0.0
    %1261 = vmatprep.mubr.f32.mxu0 0.0
    %1262 = vmatmul.mubr.f32.gmra.mxu0 %v217
    %v1263 = vpop.f32.mrf.mxu0
    %v1264 = vadd.f32 0.0, %v1263
    %v1265 = vpop.f32.mrf.mxu0
    %1266 = vdwg.mxu0
    %v1267 = vmul.f32 %v1264, %v1264
    %v1268 = vmul.f32 %v1267, 5.952381e-06
    %v1269 = vadd.f32 %v1196, %v1268
    %s1270 = scalar_lea.vmem [#allocation6], 40
    %v1271 = vld [vmem:[%s1270] sm:$0xff]
    %1273 = vrot.lane.b32.xlu0 %v1271, 112
    %v1274 = vpop.permute.xlu0 %1273
    %v1276 = vadd.f32 %v1271, %v1274
    %v1278 = vsel %vm58, %v1276, 0
    %1280 = vmatprep.subr.mxu0 0.0
    %1281 = vmatpush1.msra.mxu0 0.0
    %1282 = vmatprep.subr.mxu0 0.0
    %1283 = vmatpush1.msra.mxu0 0.0
    %1284 = vmatprep.subr.mxu0 0.0
    %1285 = vmatpush1.msra.mxu0 0.0
    %1286 = vmatprep.subr.mxu0 0.0
    %1287 = vmatpush1.msra.mxu0 0.0
    %1288 = vmatprep.subr.mxu0 0.0
    %1289 = vmatpush1.msra.mxu0 0.0
    %1290 = vmatprep.subr.mxu0 0.0
    %1291 = vmatpush1.msra.mxu0 0.0
    %1292 = vmatprep.subr.mxu0 0.0
    %1293 = vmatpush1.msra.mxu0 0.0
    %1294 = vmatprep.subr.mxu0 0.0
    %1295 = vmatpush1.msra.mxu0 0.0
    %1296 = vmatprep.subr.mxu0 0.0
    %1297 = vmatpush1.msra.mxu0 0.0
    %1298 = vmatprep.subr.mxu0 0.0
    %1299 = vmatpush1.msra.mxu0 0.0
    %1300 = vmatprep.subr.mxu0 0.0
    %1301 = vmatpush1.msra.mxu0 0.0
    %1302 = vmatprep.subr.mxu0 0.0
    %1303 = vmatpush1.msra.mxu0 0.0
    %1304 = vmatprep.subr.mxu0 0.0
    %1305 = vmatpush1.msra.mxu0 0.0
    %1306 = vmatprep.subr.mxu0 0.0
    %1307 = vmatpush1.msra.mxu0 0.0
    %1308 = vmatprep.subr.mxu0 0.0
    %1309 = vmatpush1.msra.mxu0 %v49
    %1310 = vmatprep.subr.mxu0 0.0
    %1311 = vmatpush1.msra.mxu0 %v48
    %1312 = vmatprep.subr.mxu0 0.0
    %1313 = vmatpush2.msra.mxu0 0.0
    %1314 = vmatprep.subr.mxu0 0.0
    %1315 = vmatpush2.msra.mxu0 0.0
    %1316 = vmatprep.subr.mxu0 0.0
    %1317 = vmatpush2.msra.mxu0 0.0
    %1318 = vmatprep.subr.mxu0 0.0
    %1319 = vmatpush2.msra.mxu0 0.0
    %1320 = vmatprep.subr.mxu0 0.0
    %1321 = vmatpush2.msra.mxu0 0.0
    %1322 = vmatprep.subr.mxu0 0.0
    %1323 = vmatpush2.msra.mxu0 0.0
    %1324 = vmatprep.subr.mxu0 0.0
    %1325 = vmatpush2.msra.mxu0 0.0
    %1326 = vmatprep.subr.mxu0 0.0
    %1327 = vmatpush2.msra.mxu0 0.0
    %1328 = vmatprep.subr.mxu0 0.0
    %1329 = vmatpush2.msra.mxu0 0.0
    %1330 = vmatprep.subr.mxu0 0.0
    %1331 = vmatpush2.msra.mxu0 0.0
    %1332 = vmatprep.subr.mxu0 0.0
    %1333 = vmatpush2.msra.mxu0 0.0
    %1334 = vmatprep.subr.mxu0 0.0
    %1335 = vmatpush2.msra.mxu0 0.0
    %1336 = vmatprep.subr.mxu0 0.0
    %1337 = vmatpush2.msra.mxu0 0.0
    %1338 = vmatprep.subr.mxu0 0.0
    %1339 = vmatpush2.msra.mxu0 0.0
    %1340 = vmatprep.subr.mxu0 0.0
    %1341 = vmatpush2.msra.mxu0 0.0
    %1342 = vmatprep.subr.mxu0 0.0
    %1343 = vmatpush2.msra.mxu0 0.0
    %1344 = vmatprep.mubr.f32.mxu0 0.0
    %1345 = vmatmul.mubr.f32.gmra.mxu0 %v1278
    %v1346 = vpop.f32.mrf.mxu0
    %v1347 = vadd.f32 0.0, %v1346
    %v1348 = vpop.f32.mrf.mxu0
    %1349 = vdwg.mxu0
    %v1350 = vmul.f32 %v1347, 0.5
    %v1351 = vtanh.pop %v1350
    %v1352 = vmul.f32 %v1351, 0.5
    %v1353 = vadd.f32 %v1352, 0.5
    %v1354 = vmul.f32 %v1353, %v1353
    %v1355 = vmul.f32 %v1354, 0.26041666
    %v1356 = vadd.f32 %v1269, %v1355
    %v1358 = vsel %vm139, %v1353, 0
    %1360 = vmatprep.subr.mxu0 0.0
    %1361 = vmatpush1.msra.mxu0 0.0
    %1362 = vmatprep.subr.mxu0 0.0
    %1363 = vmatpush1.msra.mxu0 0.0
    %1364 = vmatprep.subr.mxu0 0.0
    %1365 = vmatpush1.msra.mxu0 0.0
    %1366 = vmatprep.subr.mxu0 0.0
    %1367 = vmatpush1.msra.mxu0 0.0
    %1368 = vmatprep.subr.mxu0 0.0
    %1369 = vmatpush1.msra.mxu0 0.0
    %1370 = vmatprep.subr.mxu0 0.0
    %1371 = vmatpush1.msra.mxu0 0.0
    %1372 = vmatprep.subr.mxu0 0.0
    %1373 = vmatpush1.msra.mxu0 0.0
    %1374 = vmatprep.subr.mxu0 0.0
    %1375 = vmatpush1.msra.mxu0 0.0
    %1376 = vmatprep.subr.mxu0 0.0
    %1377 = vmatpush1.msra.mxu0 0.0
    %1378 = vmatprep.subr.mxu0 0.0
    %1379 = vmatpush1.msra.mxu0 0.0
    %1380 = vmatprep.subr.mxu0 0.0
    %1381 = vmatpush1.msra.mxu0 0.0
    %1382 = vmatprep.subr.mxu0 0.0
    %1383 = vmatpush1.msra.mxu0 0.0
    %1384 = vmatprep.subr.mxu0 0.0
    %1385 = vmatpush1.msra.mxu0 0.0
    %1386 = vmatprep.subr.mxu0 0.0
    %1387 = vmatpush1.msra.mxu0 0.0
    %1388 = vmatprep.subr.mxu0 0.0
    %1389 = vmatpush1.msra.mxu0 0.0
    %1390 = vmatprep.subr.mxu0 0.0
    %1391 = vmatpush1.msra.mxu0 %v50
    %1392 = vmatprep.subr.mxu0 0.0
    %1393 = vmatpush2.msra.mxu0 0.0
    %1394 = vmatprep.subr.mxu0 0.0
    %1395 = vmatpush2.msra.mxu0 0.0
    %1396 = vmatprep.subr.mxu0 0.0
    %1397 = vmatpush2.msra.mxu0 0.0
    %1398 = vmatprep.subr.mxu0 0.0
    %1399 = vmatpush2.msra.mxu0 0.0
    %1400 = vmatprep.subr.mxu0 0.0
    %1401 = vmatpush2.msra.mxu0 0.0
    %1402 = vmatprep.subr.mxu0 0.0
    %1403 = vmatpush2.msra.mxu0 0.0
    %1404 = vmatprep.subr.mxu0 0.0
    %1405 = vmatpush2.msra.mxu0 0.0
    %1406 = vmatprep.subr.mxu0 0.0
    %1407 = vmatpush2.msra.mxu0 0.0
    %1408 = vmatprep.subr.mxu0 0.0
    %1409 = vmatpush2.msra.mxu0 0.0
    %1410 = vmatprep.subr.mxu0 0.0
    %1411 = vmatpush2.msra.mxu0 0.0
    %1412 = vmatprep.subr.mxu0 0.0
    %1413 = vmatpush2.msra.mxu0 0.0
    %1414 = vmatprep.subr.mxu0 0.0
    %1415 = vmatpush2.msra.mxu0 0.0
    %1416 = vmatprep.subr.mxu0 0.0
    %1417 = vmatpush2.msra.mxu0 0.0
    %1418 = vmatprep.subr.mxu0 0.0
    %1419 = vmatpush2.msra.mxu0 0.0
    %1420 = vmatprep.subr.mxu0 0.0
    %1421 = vmatpush2.msra.mxu0 0.0
    %1422 = vmatprep.subr.mxu0 0.0
    %1423 = vmatpush2.msra.mxu0 0.0
    %1424 = vmatprep.mubr.f32.mxu0 0.0
    %1425 = vmatmul.mubr.f32.gmra.mxu0 %v1358
    %v1426 = vpop.f32.mrf.mxu0
    %v1427 = vadd.f32 0.0, %v1426
    %v1428 = vpop.f32.mrf.mxu0
    %1429 = vdwg.mxu0
    %v1430 = vmul.f32 %v1427, %v1427
    %v1431 = vmul.f32 %v1430, 5.952381e-06
    %v1432 = vadd.f32 %v1356, %v1431
    %1433 = vmatprep.subr.mxu0 0.0
    %1434 = vmatpush1.msra.mxu0 0.0
    %1435 = vmatprep.subr.mxu0 0.0
    %1436 = vmatpush1.msra.mxu0 0.0
    %1437 = vmatprep.subr.mxu0 0.0
    %1438 = vmatpush1.msra.mxu0 0.0
    %1439 = vmatprep.subr.mxu0 0.0
    %1440 = vmatpush1.msra.mxu0 0.0
    %1441 = vmatprep.subr.mxu0 0.0
    %1442 = vmatpush1.msra.mxu0 0.0
    %1443 = vmatprep.subr.mxu0 0.0
    %1444 = vmatpush1.msra.mxu0 0.0
    %1445 = vmatprep.subr.mxu0 0.0
    %1446 = vmatpush1.msra.mxu0 0.0
    %1447 = vmatprep.subr.mxu0 0.0
    %1448 = vmatpush1.msra.mxu0 0.0
    %1449 = vmatprep.subr.mxu0 0.0
    %1450 = vmatpush1.msra.mxu0 0.0
    %1451 = vmatprep.subr.mxu0 0.0
    %1452 = vmatpush1.msra.mxu0 0.0
    %1453 = vmatprep.subr.mxu0 0.0
    %1454 = vmatpush1.msra.mxu0 0.0
    %1455 = vmatprep.subr.mxu0 0.0
    %1456 = vmatpush1.msra.mxu0 0.0
    %1457 = vmatprep.subr.mxu0 0.0
    %1458 = vmatpush1.msra.mxu0 0.0
    %1459 = vmatprep.subr.mxu0 0.0
    %1460 = vmatpush1.msra.mxu0 0.0
    %1461 = vmatprep.subr.mxu0 0.0
    %1462 = vmatpush1.msra.mxu0 0.0
    %1463 = vmatprep.subr.mxu0 0.0
    %1464 = vmatpush1.msra.mxu0 %v1353
    %1465 = vmatprep.subr.mxu0 0.0
    %1466 = vmatpush2.msra.mxu0 0.0
    %1467 = vmatprep.subr.mxu0 0.0
    %1468 = vmatpush2.msra.mxu0 0.0
    %1469 = vmatprep.subr.mxu0 0.0
    %1470 = vmatpush2.msra.mxu0 0.0
    %1471 = vmatprep.subr.mxu0 0.0
    %1472 = vmatpush2.msra.mxu0 0.0
    %1473 = vmatprep.subr.mxu0 0.0
    %1474 = vmatpush2.msra.mxu0 0.0
    %1475 = vmatprep.subr.mxu0 0.0
    %1476 = vmatpush2.msra.mxu0 0.0
    %1477 = vmatprep.subr.mxu0 0.0
    %1478 = vmatpush2.msra.mxu0 0.0
    %1479 = vmatprep.subr.mxu0 0.0
    %1480 = vmatpush2.msra.mxu0 0.0
    %1481 = vmatprep.subr.mxu0 0.0
    %1482 = vmatpush2.msra.mxu0 0.0
    %1483 = vmatprep.subr.mxu0 0.0
    %1484 = vmatpush2.msra.mxu0 0.0
    %1485 = vmatprep.subr.mxu0 0.0
    %1486 = vmatpush2.msra.mxu0 0.0
    %1487 = vmatprep.subr.mxu0 0.0
    %1488 = vmatpush2.msra.mxu0 0.0
    %1489 = vmatprep.subr.mxu0 0.0
    %1490 = vmatpush2.msra.mxu0 0.0
    %1491 = vmatprep.subr.mxu0 0.0
    %1492 = vmatpush2.msra.mxu0 0.0
    %1493 = vmatprep.subr.mxu0 0.0
    %1494 = vmatpush2.msra.mxu0 0.0
    %1495 = vmatprep.subr.mxu0 0.0
    %1496 = vmatpush2.msra.mxu0 0.0
    %1497 = vmatprep.mubr.f32.mxu0 0.0
    %1498 = vmatmul.mubr.f32.gmra.mxu0 %v217
    %v1499 = vpop.f32.mrf.mxu0
    %v1500 = vadd.f32 0.0, %v1499
    %v1501 = vpop.f32.mrf.mxu0
    %1502 = vdwg.mxu0
    %v1503 = vmul.f32 %v1500, %v1500
    %v1504 = vmul.f32 %v1503, 5.952381e-06
    %v1505 = vadd.f32 %v1432, %v1504
    %v1506 = vmul.f32 %v766, %v881
    %v1507 = vadd.f32 %v768, %v1506
    %v1508 = vmul.f32 %v771, %v1117
    %v1509 = vadd.f32 %v1507, %v1508
    %v1510 = vmul.f32 %v775, %v1353
    %v1511 = vadd.f32 %v1509, %v1510
    %v1512 = vmax.f32 %v1511, 0.0
    %v1513 = vmul.f32 %v1512, -0.0078125
    %v1514 = vadd.f32 %v1505, %v1513
    %v1515 = vmul.f32 %v783, %v881
    %v1516 = vadd.f32 %v785, %v1515
    %v1517 = vmul.f32 %v788, %v1117
    %v1518 = vadd.f32 %v1516, %v1517
    %v1519 = vmul.f32 %v792, %v1353
    %v1520 = vadd.f32 %v1518, %v1519
    %v1521 = vmax.f32 %v1520, 0.0
    %v1522 = vmul.f32 %v1521, -0.0078125
    %v1523 = vadd.f32 %v1514, %v1522
    %v1524 = vsel %vm139, %v1523, 0.0
    %1525 = vadd.xlane.f32.xlu0 %v1524
    %v1526 = vpop.xlane.xlu0 %1525
    %v1527 = vrot.slane %v1526, 4
    %v1528 = vadd.f32 %v1526, %v1527
    %v1529 = vrot.slane %v1528, 2
    %v1530 = vadd.f32 %v1528, %v1529
    %v1531 = vrot.slane %v1530, 1
    %v1532 = vadd.f32 %v1530, %v1531
    %s1533 = vtos %v1532
    %v1534 = vstv %s1533
    %1535 = vst [vmem:[#allocation7] sm:$0x1] %v1534
    // Predicated region
    $region30: #{tpu_custom_call.1} parent=1 // pred_check
      _
    $region31: #{tpu_custom_call.1} parent=1 // pred_check_branch
      %1537 = sbr.rel (0) target = $region33
    $region32: #{tpu_custom_call.1} parent=1 // pred_region
      %s1539 = ssub.s32 16, 16
      %1540 = vsyncadd [#allocation4], %s1539
      %s1542 = sshll.u32 [#allocation7], 4
      %s1543 = int_to_ptr.vmem [resolvable:$true] %s1542
      %1545 = dma.vmem_to_hbm [thread:$0]  %s1543, 16, %s5, [#allocation4]
    $region33: #{tpu_custom_call.1} parent=1 // pred_fallthru
      _
    // Predicated region
    $region34: #{tpu_custom_call.1} parent=1 // pred_check
      _
    $region35: #{tpu_custom_call.1} parent=1 // pred_check_branch
      %1547 = sbr.rel (0) target = $region37
    $region36: #{tpu_custom_call.1} parent=1 // pred_region
      %1548 = dma.done [#allocation4], 16
    $region37: #{tpu_custom_call.1} parent=1 // pred_fallthru
      _
    %1549 = vsyncpa [#allocation3], 1
    %1550 = vsyncpa [#allocation4], 1
    %1551 = vsyncpa [#allocation5], 1

</llo_original>
